<compile_context>
chip_gen: v5e
topology: v5e:2x2
jax: 0.10.0
libtpu: 0.0.40
codegen_flags: <defaults>
</compile_context>

<pallas_src>
import functools

import jax
import jax.numpy as jnp
import numpy as np
from jax import lax
from jax.experimental import pallas as pl
from jax.experimental.pallas import tpu as pltpu

# f32 matmuls on TPU default to reduced precision; force full f32 so the
# pure-JAX reference matches the kernel at tight tolerance.
jax.config.update("jax_default_matmul_precision", "highest")


# ----------------------------- configuration --------------------------------
LAYERS = 2                 # cfg.model.layers
N_TOTAL = LAYERS + 1       # self.layer
HIDDEN = 32                # cfg.model.hidden_dim
RESIDUAL = True            # cfg.model.residual
REPEAT = True              # cfg.training.repeat

INPUT_DIM = 16
OUTPUT_DIM = 8
BATCH = 2

REP_DIM = INPUT_DIM // 4 if REPEAT else (INPUT_DIM - 2) // 2
NOISE_DIM = REP_DIM if REPEAT else 1
TWO_H = 2 * HIDDEN                                   # fused activation width
OUT_W = 2 * OUTPUT_DIM                               # fused output width
W_SLAB_ROWS = INPUT_DIM + N_TOTAL * TWO_H            # 16 + 3*64 = 208


# ------------------------------ Pallas kernel --------------------------------
def _lsde_fused_kernel(hidden, residual, n_total, input_dim, out_width,
                       compute_dtype, x_ref, w_ref, b_ref, o_ref):
    """Fused LSDE forward on one batch tile.

    w_ref: one resident slab; rows [0, input_dim) hold the fused
    encoder+noise_encoder, followed by n_total block-diagonal [2H, 2H] layer
    blocks (the last layer's [2H, 2*OUTPUT_DIM] block is zero-padded to 2H
    lanes).  b_ref row k is layer k's fused bias (f32).  Accumulation is f32;
    operands may be bf16.
    """
    two_h = 2 * hidden
    x = x_ref[...]                                                    # [TB, D_in]

    # Fused encoder + noise_encoder: one MXU dot; ReLU only on the drift
    # (encoder) half — the noise_encoder has no activation.
    h = jnp.dot(x, w_ref[0:input_dim, :],
                preferred_element_type=jnp.float32) + b_ref[0:1, :]
    lane = lax.broadcasted_iota(jnp.int32, h.shape, dimension=1)
    act = jnp.where(lane < hidden, jnp.maximum(h, 0.0), h)
    act = act.astype(compute_dtype)                                   # [TB, 2H]

    row = input_dim
    for idx in range(n_total):
        w = w_ref[row:row + two_h, :]                                 # [2H, 2H]
        bias = b_ref[idx + 1:idx + 2, :]                              # [1, 2H]
        new = jnp.maximum(
            jnp.dot(act, w, preferred_element_type=jnp.float32) + bias, 0.0)
        if idx == n_total - 1:
            act = new                                                 # stay f32
        elif residual:
            act = (act + new).astype(compute_dtype)
        else:
            act = new.astype(compute_dtype)
        row += two_h

    # TODO(synk): emitting a lane-dense [TB, 128] output (unmasked vst) would
    # cost 8x output HBM bytes; skipped since the kernel is overhead-bound.
    o_ref[...] = act[:, :out_width].astype(o_ref.dtype)               # [TB, 2*out]


# --------------------------- weight fusion (wrapper) --------------------------
def fuse_params(p, dtype=jnp.float32):
    """Pack all branch weights into two grid-invariant slabs.

    w_slab [W_SLAB_ROWS, 2H]: encoder/noise-encoder block (zero-embedded) then
        one block-diagonal [2H, 2H] block per layer (zeros off-diagonal; the
        last layer is zero-padded to 2H output lanes).
    b_slab [N_TOTAL+1, 2H]: fused biases, always f32 (accumulation stays f32).
    """
    H = HIDDEN
    w0 = jnp.zeros((INPUT_DIM, TWO_H), jnp.float32)
    w0 = w0.at[:, :H].set(p["w_enc"])
    w0 = w0.at[2 * REP_DIM:2 * REP_DIM + NOISE_DIM, H:].set(p["w_ne"])
    w_blocks = [w0]
    b_rows = [jnp.concatenate([p["b_enc"], p["b_ne"]], axis=1)]       # [1, 2H]

    for i in range(N_TOTAL):
        wd, bd = p[f"wd{i}"], p[f"bd{i}"]
        wn, bn = p[f"wn{i}"], p[f"bn{i}"]
        out_d = wd.shape[1]
        w = jnp.zeros((TWO_H, TWO_H), jnp.float32)
        w = w.at[:H, :out_d].set(wd)
        w = w.at[H:, out_d:2 * out_d].set(wn)
        b = jnp.zeros((1, TWO_H), jnp.float32)
        b = b.at[:, :out_d].set(bd)
        b = b.at[:, out_d:2 * out_d].set(bn)
        w_blocks.append(w)
        b_rows.append(b)

    return {
        "w_slab": jnp.concatenate(w_blocks, axis=0).astype(dtype),
        "b_slab": jnp.concatenate(b_rows, axis=0).astype(jnp.float32),
    }


# --------------------------- plain-XLA tiny-batch path ------------------------
def _lsde_xla(x, fused):
    """Plain-XLA path for tiny batches (pallas_call would be pure overhead)."""
    w = fused["w_slab"].astype(jnp.float32)
    bs = fused["b_slab"]
    h = x.astype(jnp.float32) @ w[:INPUT_DIM] + bs[0:1]
    act = jnp.concatenate(
        [jnp.maximum(h[:, :HIDDEN], 0.0), h[:, HIDDEN:]], axis=1)
    row = INPUT_DIM
    for i in range(N_TOTAL):
        new = jnp.maximum(act @ w[row:row + TWO_H] + bs[i + 1:i + 2], 0.0)
        if RESIDUAL and i != N_TOTAL - 1:
            act = act + new
        else:
            act = new
        row += TWO_H
    return act[:, :OUTPUT_DIM], act[:, OUTPUT_DIM:OUT_W]


# ------------------------------ wrapper --------------------------------------
def _run_pallas(x_in, w_slab, b_slab, *, tb, grid, out_shape, kernel, cost,
                single_buffer_weights):
    # Grid-invariant weight slabs: constant index_map keeps them resident; with
    # pipeline_mode=pl.Buffered(1) they are single-buffered (no second VMEM
    # buffer / extra DMA bookkeeping).
    wkw = {"pipeline_mode": pl.Buffered(1)} if single_buffer_weights else {}
    in_specs = [
        pl.BlockSpec((tb, INPUT_DIM), lambda i: (i, 0)),
        pl.BlockSpec(w_slab.shape, lambda i: (0, 0), **wkw),
        pl.BlockSpec(b_slab.shape, lambda i: (0, 0), **wkw),
    ]
    out_specs = pl.BlockSpec((tb, OUT_W), lambda i: (i, 0))
    return pl.pallas_call(
        kernel,
        out_shape=out_shape,
        grid=grid,
        in_specs=in_specs,
        out_specs=out_specs,
        compiler_params=pltpu.CompilerParams(
            dimension_semantics=("parallel",)),
        cost_estimate=cost,
    )(x_in, w_slab, b_slab)


def lsde_forward(x, fused, *, batch_block=512, min_pallas_rows=0):
    """x: [B, INPUT_DIM].  fused: output of fuse_params.  Returns (drift, noise).

    batch_block: rows per grid step (sweep 512-2048; ~1 MiB VMEM at 2048).
    min_pallas_rows: below this row count use the plain-XLA path (a pallas_call
        is pure launch overhead at B~2; SDE solvers should batch their (t, x)
        evaluations into one call, or pass e.g. min_pallas_rows=256).
    """
    b = x.shape[0]
    if b < min_pallas_rows:
        return _lsde_xla(x, fused)

    w_slab = fused["w_slab"]
    b_slab = fused["b_slab"]
    cdt = w_slab.dtype
    x_in = x.astype(cdt)

    # Tile choice: a single full-array tile for small b (block == full dims is
    # always layout-legal), otherwise a sublane-aligned tile with a masked
    # partial tail tile — no wrapper-side pad copy of x.
    row_align = 8 * (4 // cdt.itemsize)                 # 8 for f32, 16 for bf16
    if b <= batch_block:
        tb = b
    else:
        tb = max((batch_block // row_align) * row_align, row_align)
    grid = (pl.cdiv(b, tb),)

    kernel = functools.partial(_lsde_fused_kernel, HIDDEN, RESIDUAL, N_TOTAL,
                               INPUT_DIM, OUT_W, cdt)
    flops_per_row = 2 * (INPUT_DIM * TWO_H + N_TOTAL * TWO_H * TWO_H)
    cost = pl.CostEstimate(
        flops=int(flops_per_row * b),
        transcendentals=0,
        bytes_accessed=int(x_in.size * x_in.dtype.itemsize
                           + b * OUT_W * 4
                           + w_slab.size * w_slab.dtype.itemsize
                           + b_slab.size * 4))
    out_shape = jax.ShapeDtypeStruct((b, OUT_W), jnp.float32)

    try:
        out = _run_pallas(x_in, w_slab, b_slab, tb=tb, grid=grid,
                          out_shape=out_shape, kernel=kernel, cost=cost,
                          single_buffer_weights=True)
    except Exception:
        # Defensive fallback for jax builds without BlockSpec pipeline_mode /
        # Buffered(1); identical semantics, just double-buffered weights.
        out = _run_pallas(x_in, w_slab, b_slab, tb=tb, grid=grid,
                          out_shape=out_shape, kernel=kernel, cost=cost,
                          single_buffer_weights=False)

    drift = out[:, :OUTPUT_DIM]
    noise = out[:, OUTPUT_DIM:]
    return drift, noise


# ------------------------- deterministic params -------------------------------
def init_params(key):
    """Per-branch weights, stored as [in, out] (pre-transposed vs. PyTorch)."""
    def lin(key, fan_in, fan_out):
        k1, k2 = jax.random.split(key)
        bound = 1.0 / np.sqrt(fan_in)
        w = jax.random.uniform(k1, (fan_in, fan_out), jnp.float32, -bound, bound)
        bb = jax.random.uniform(k2, (1, fan_out), jnp.float32, -bound, bound)
        return w, bb

    params = {}
    keys = jax.random.split(key, 2 + 2 * N_TOTAL)
    params["w_enc"], params["b_enc"] = lin(keys[0], INPUT_DIM, HIDDEN)
    params["w_ne"], params["b_ne"] = lin(keys[1], NOISE_DIM, HIDDEN)
    for i in range(N_TOTAL):
        out_d = OUTPUT_DIM if i == N_TOTAL - 1 else HIDDEN
        params[f"wd{i}"], params[f"bd{i}"] = lin(keys[2 + i], HIDDEN, out_d)
        params[f"wn{i}"], params[f"bn{i}"] = lin(keys[2 + N_TOTAL + i], HIDDEN, out_d)
    return params


# --------------------------- pure-JAX reference --------------------------------
def lsde_reference(x, p):
    """Unfused reference, mirrors the PyTorch forward exactly."""
    z = jnp.maximum(x @ p["w_enc"] + p["b_enc"], 0.0)
    step = x[:, 2 * REP_DIM: 2 * REP_DIM + NOISE_DIM]
    noise = step @ p["w_ne"] + p["b_ne"]
    drift = z
    for i in range(N_TOTAL):
        d_new = jnp.maximum(drift @ p[f"wd{i}"] + p[f"bd{i}"], 0.0)
        n_new = jnp.maximum(noise @ p[f"wn{i}"] + p[f"bn{i}"], 0.0)
        if RESIDUAL and i != N_TOTAL - 1:
            drift, noise = drift + d_new, noise + n_new
        else:
            drift, noise = d_new, n_new
    return drift, noise


if __name__ == "__main__":
    key = jax.random.PRNGKey(0)
    kx, kp, kx2 = jax.random.split(key, 3)
    params = init_params(kp)
    fused = fuse_params(params)                                   # f32 slabs

    # Small shape consistent with the module: batch=2, input_dim=16.
    x = jax.random.normal(kx, (BATCH, INPUT_DIM), jnp.float32)
    drift, noise = lsde_forward(x, fused)
    jax.block_until_ready((drift, noise))
    d_ref, n_ref = lsde_reference(x, params)
    np.testing.assert_allclose(np.asarray(drift), np.asarray(d_ref),
                               rtol=1e-5, atol=1e-5)
    np.testing.assert_allclose(np.asarray(noise), np.asarray(n_ref),
                               rtol=1e-5, atol=1e-5)

    # Tiny-batch XLA fallback path (per-step SDE-solver usage).
    d_fb, n_fb = lsde_forward(x, fused, min_pallas_rows=256)
    np.testing.assert_allclose(np.asarray(d_fb), np.asarray(d_ref),
                               rtol=1e-5, atol=1e-5)
    np.testing.assert_allclose(np.asarray(n_fb), np.asarray(n_ref),
                               rtol=1e-5, atol=1e-5)

    # Large batch: multi-tile parallel grid with a partial tail tile (no pad copy).
    x_big = jax.random.normal(kx2, (600, INPUT_DIM), jnp.float32)
    d_big, n_big = lsde_forward(x_big, fused, batch_block=256)
    jax.block_until_ready((d_big, n_big))
    d_ref2, n_ref2 = lsde_reference(x_big, params)
    np.testing.assert_allclose(np.asarray(d_big), np.asarray(d_ref2),
                               rtol=1e-5, atol=1e-5)
    np.testing.assert_allclose(np.asarray(n_big), np.asarray(n_ref2),
                               rtol=1e-5, atol=1e-5)

    # bf16 operands for the bf16-native MXUs (v6e/v7x); f32 accumulation.
    fused_bf16 = fuse_params(params, dtype=jnp.bfloat16)
    d_bf, n_bf = lsde_forward(x_big, fused_bf16)
    jax.block_until_ready((d_bf, n_bf))
    np.testing.assert_allclose(np.asarray(d_bf), np.asarray(d_ref2),
                               rtol=5e-2, atol=5e-2)
    np.testing.assert_allclose(np.asarray(n_bf), np.asarray(n_ref2),
                               rtol=5e-2, atol=5e-2)

    print("KERNEL_OK")
</pallas_src>

<mosaic_0001>
module attributes {stable_mosaic.version = 11 : i64} {
  func.func @_lsde_fused_kernel(%arg0: i32, %arg1: memref<2x16xf32, #tpu.memory_space<vmem>>, %arg2: memref<208x64xf32, #tpu.memory_space<vmem>>, %arg3: memref<4x64xf32, #tpu.memory_space<vmem>>, %arg4: memref<2x16xf32, #tpu.memory_space<vmem>>) attributes {dimension_semantics = [#tpu.dimension_semantics<parallel>], iteration_bounds = array<i64: 1>, scalar_prefetch = 0 : i64, scratch_operands = 0 : i64, tpu.core_type = #tpu.core_type<tc>, window_params = [{transform_indices = @transform_0, window_bounds = array<i64: 2, 16>}, {pipeline_mode = #tpu.pipeline_mode<synchronous>, transform_indices = @transform_1, window_bounds = array<i64: 208, 64>}, {pipeline_mode = #tpu.pipeline_mode<synchronous>, transform_indices = @transform_2, window_bounds = array<i64: 4, 64>}, {transform_indices = @transform_3, window_bounds = array<i64: 2, 16>}]} {
    %c0 = arith.constant 0 : index
    %c0_0 = arith.constant 0 : index
    %0 = vector.load %arg1[%c0, %c0_0] : memref<2x16xf32, #tpu.memory_space<vmem>>, vector<2x16xf32>
    %c0_1 = arith.constant 0 : index
    %c0_2 = arith.constant 0 : index
    %1 = vector.load %arg2[%c0_1, %c0_2] : memref<208x64xf32, #tpu.memory_space<vmem>>, vector<16x64xf32>
    %cst = arith.constant dense<0.000000e+00> : vector<2x64xf32>
    %2 = tpu.matmul %0, %1, %cst {dimension_numbers = #tpu.dot_dimension_numbers<[1], [0], [0], [1], [0, 0, 1, 1], [], []>, precision = #tpu.contract_precision<fp32>} : vector<2x16xf32>, vector<16x64xf32>, vector<2x64xf32> -> vector<2x64xf32>
    %c0_3 = arith.constant 0 : index
    %c0_4 = arith.constant 0 : index
    %3 = vector.load %arg3[%c0_3, %c0_4] : memref<4x64xf32, #tpu.memory_space<vmem>>, vector<1x64xf32>
    %4 = vector.broadcast %3 : vector<1x64xf32> to vector<2x64xf32>
    %5 = arith.addf %2, %4 : vector<2x64xf32>
    %6 = tpu.iota {dimensions = array<i32: 1>} : vector<2x64xi32>
    %c32_i32 = arith.constant 32 : i32
    %7 = vector.broadcast %c32_i32 : i32 to vector<2x64xi32>
    %8 = arith.cmpi slt, %6, %7 : vector<2x64xi32>
    %cst_5 = arith.constant 0.000000e+00 : f32
    %9 = vector.broadcast %cst_5 : f32 to vector<2x64xf32>
    %10 = arith.maximumf %5, %9 : vector<2x64xf32>
    %11 = arith.select %8, %10, %5 : vector<2x64xi1>, vector<2x64xf32>
    %c16 = arith.constant 16 : index
    %c0_6 = arith.constant 0 : index
    %12 = vector.load %arg2[%c16, %c0_6] : memref<208x64xf32, #tpu.memory_space<vmem>>, vector<64x64xf32>
    %c1 = arith.constant 1 : index
    %c0_7 = arith.constant 0 : index
    %13 = vector.load %arg3[%c1, %c0_7] : memref<4x64xf32, #tpu.memory_space<vmem>>, vector<1x64xf32>
    %cst_8 = arith.constant dense<0.000000e+00> : vector<2x64xf32>
    %14 = tpu.matmul %11, %12, %cst_8 {dimension_numbers = #tpu.dot_dimension_numbers<[1], [0], [0], [1], [0, 0, 1, 1], [], []>, precision = #tpu.contract_precision<fp32>} : vector<2x64xf32>, vector<64x64xf32>, vector<2x64xf32> -> vector<2x64xf32>
    %15 = vector.broadcast %13 : vector<1x64xf32> to vector<2x64xf32>
    %16 = arith.addf %14, %15 : vector<2x64xf32>
    %cst_9 = arith.constant 0.000000e+00 : f32
    %17 = vector.broadcast %cst_9 : f32 to vector<2x64xf32>
    %18 = arith.maximumf %16, %17 : vector<2x64xf32>
    %19 = arith.addf %11, %18 : vector<2x64xf32>
    %c80 = arith.constant 80 : index
    %c0_10 = arith.constant 0 : index
    %20 = vector.load %arg2[%c80, %c0_10] : memref<208x64xf32, #tpu.memory_space<vmem>>, vector<64x64xf32>
    %c2 = arith.constant 2 : index
    %c0_11 = arith.constant 0 : index
    %21 = vector.load %arg3[%c2, %c0_11] : memref<4x64xf32, #tpu.memory_space<vmem>>, vector<1x64xf32>
    %cst_12 = arith.constant dense<0.000000e+00> : vector<2x64xf32>
    %22 = tpu.matmul %19, %20, %cst_12 {dimension_numbers = #tpu.dot_dimension_numbers<[1], [0], [0], [1], [0, 0, 1, 1], [], []>, precision = #tpu.contract_precision<fp32>} : vector<2x64xf32>, vector<64x64xf32>, vector<2x64xf32> -> vector<2x64xf32>
    %23 = vector.broadcast %21 : vector<1x64xf32> to vector<2x64xf32>
    %24 = arith.addf %22, %23 : vector<2x64xf32>
    %cst_13 = arith.constant 0.000000e+00 : f32
    %25 = vector.broadcast %cst_13 : f32 to vector<2x64xf32>
    %26 = arith.maximumf %24, %25 : vector<2x64xf32>
    %27 = arith.addf %19, %26 : vector<2x64xf32>
    %c144 = arith.constant 144 : index
    %c0_14 = arith.constant 0 : index
    %28 = vector.load %arg2[%c144, %c0_14] : memref<208x64xf32, #tpu.memory_space<vmem>>, vector<64x64xf32>
    %c3 = arith.constant 3 : index
    %c0_15 = arith.constant 0 : index
    %29 = vector.load %arg3[%c3, %c0_15] : memref<4x64xf32, #tpu.memory_space<vmem>>, vector<1x64xf32>
    %cst_16 = arith.constant dense<0.000000e+00> : vector<2x64xf32>
    %30 = tpu.matmul %27, %28, %cst_16 {dimension_numbers = #tpu.dot_dimension_numbers<[1], [0], [0], [1], [0, 0, 1, 1], [], []>, precision = #tpu.contract_precision<fp32>} : vector<2x64xf32>, vector<64x64xf32>, vector<2x64xf32> -> vector<2x64xf32>
    %31 = vector.broadcast %29 : vector<1x64xf32> to vector<2x64xf32>
    %32 = arith.addf %30, %31 : vector<2x64xf32>
    %cst_17 = arith.constant 0.000000e+00 : f32
    %33 = vector.broadcast %cst_17 : f32 to vector<2x64xf32>
    %34 = arith.maximumf %32, %33 : vector<2x64xf32>
    %35 = vector.extract_strided_slice %34 {offsets = [0, 0], sizes = [2, 16], strides = [1, 1]} : vector<2x64xf32> to vector<2x16xf32>
    %c0_18 = arith.constant 0 : index
    %c0_19 = arith.constant 0 : index
    %36 = vector.load %arg4[%c0_18, %c0_19] : memref<2x16xf32, #tpu.memory_space<vmem>>, vector<2x16xf32>
    tpu.vector_store %arg4[%c0_18, %c0_19], %35 {strides = array<i32>} : memref<2x16xf32, #tpu.memory_space<vmem>>, vector<2x16xf32>,
    return
  }
  func.func @transform_0(%arg0: i32) -> (i32, i32) {
    %c0_i32 = arith.constant 0 : i32
    %c0_i32_0 = arith.constant 0 : i32
    return %arg0, %c0_i32 : i32, i32
  }
  func.func @transform_1(%arg0: i32) -> (i32, i32) {
    %c0_i32 = arith.constant 0 : i32
    %c0_i32_0 = arith.constant 0 : i32
    %c0_i32_1 = arith.constant 0 : i32
    return %c0_i32, %c0_i32_0 : i32, i32
  }
  func.func @transform_2(%arg0: i32) -> (i32, i32) {
    %c0_i32 = arith.constant 0 : i32
    %c0_i32_0 = arith.constant 0 : i32
    %c0_i32_1 = arith.constant 0 : i32
    return %c0_i32, %c0_i32_0 : i32, i32
  }
  func.func @transform_3(%arg0: i32) -> (i32, i32) {
    %c0_i32 = arith.constant 0 : i32
    %c0_i32_0 = arith.constant 0 : i32
    return %arg0, %c0_i32 : i32, i32
  }
}

module attributes {stable_mosaic.version = 11 : i64} {
  func.func @_lsde_fused_kernel(%arg0: i32, %arg1: memref<2x16xf32, #tpu.memory_space<vmem>>, %arg2: memref<208x64xf32, #tpu.memory_space<vmem>>, %arg3: memref<4x64xf32, #tpu.memory_space<vmem>>, %arg4: memref<2x16xf32, #tpu.memory_space<vmem>>) attributes {dimension_semantics = [#tpu.dimension_semantics<parallel>], iteration_bounds = array<i64: 1>, scalar_prefetch = 0 : i64, scratch_operands = 0 : i64, tpu.core_type = #tpu.core_type<tc>, window_params = [{transform_indices = @transform_0, window_bounds = array<i64: 2, 16>}, {pipeline_mode = #tpu.pipeline_mode<synchronous>, transform_indices = @transform_1, window_bounds = array<i64: 208, 64>}, {pipeline_mode = #tpu.pipeline_mode<synchronous>, transform_indices = @transform_2, window_bounds = array<i64: 4, 64>}, {transform_indices = @transform_3, window_bounds = array<i64: 2, 16>}]} {
    %c0 = arith.constant 0 : index
    %c0_0 = arith.constant 0 : index
    %0 = vector.load %arg1[%c0, %c0_0] : memref<2x16xf32, #tpu.memory_space<vmem>>, vector<2x16xf32>
    %c0_1 = arith.constant 0 : index
    %c0_2 = arith.constant 0 : index
    %1 = vector.load %arg2[%c0_1, %c0_2] : memref<208x64xf32, #tpu.memory_space<vmem>>, vector<16x64xf32>
    %cst = arith.constant dense<0.000000e+00> : vector<2x64xf32>
    %2 = tpu.matmul %0, %1, %cst {dimension_numbers = #tpu.dot_dimension_numbers<[1], [0], [0], [1], [0, 0, 1, 1], [], []>, precision = #tpu.contract_precision<fp32>} : vector<2x16xf32>, vector<16x64xf32>, vector<2x64xf32> -> vector<2x64xf32>
    %c0_3 = arith.constant 0 : index
    %c0_4 = arith.constant 0 : index
    %3 = vector.load %arg3[%c0_3, %c0_4] : memref<4x64xf32, #tpu.memory_space<vmem>>, vector<1x64xf32>
    %4 = vector.broadcast %3 : vector<1x64xf32> to vector<2x64xf32>
    %5 = arith.addf %2, %4 : vector<2x64xf32>
    %6 = tpu.iota {dimensions = array<i32: 1>} : vector<2x64xi32>
    %c32_i32 = arith.constant 32 : i32
    %7 = vector.broadcast %c32_i32 : i32 to vector<2x64xi32>
    %8 = arith.cmpi slt, %6, %7 : vector<2x64xi32>
    %cst_5 = arith.constant 0.000000e+00 : f32
    %9 = vector.broadcast %cst_5 : f32 to vector<2x64xf32>
    %10 = arith.maximumf %5, %9 : vector<2x64xf32>
    %11 = arith.select %8, %10, %5 : vector<2x64xi1>, vector<2x64xf32>
    %c16 = arith.constant 16 : index
    %c0_6 = arith.constant 0 : index
    %12 = vector.load %arg2[%c16, %c0_6] : memref<208x64xf32, #tpu.memory_space<vmem>>, vector<64x64xf32>
    %c1 = arith.constant 1 : index
    %c0_7 = arith.constant 0 : index
    %13 = vector.load %arg3[%c1, %c0_7] : memref<4x64xf32, #tpu.memory_space<vmem>>, vector<1x64xf32>
    %cst_8 = arith.constant dense<0.000000e+00> : vector<2x64xf32>
    %14 = tpu.matmul %11, %12, %cst_8 {dimension_numbers = #tpu.dot_dimension_numbers<[1], [0], [0], [1], [0, 0, 1, 1], [], []>, precision = #tpu.contract_precision<fp32>} : vector<2x64xf32>, vector<64x64xf32>, vector<2x64xf32> -> vector<2x64xf32>
    %15 = vector.broadcast %13 : vector<1x64xf32> to vector<2x64xf32>
    %16 = arith.addf %14, %15 : vector<2x64xf32>
    %cst_9 = arith.constant 0.000000e+00 : f32
    %17 = vector.broadcast %cst_9 : f32 to vector<2x64xf32>
    %18 = arith.maximumf %16, %17 : vector<2x64xf32>
    %19 = arith.addf %11, %18 : vector<2x64xf32>
    %c80 = arith.constant 80 : index
    %c0_10 = arith.constant 0 : index
    %20 = vector.load %arg2[%c80, %c0_10] : memref<208x64xf32, #tpu.memory_space<vmem>>, vector<64x64xf32>
    %c2 = arith.constant 2 : index
    %c0_11 = arith.constant 0 : index
    %21 = vector.load %arg3[%c2, %c0_11] : memref<4x64xf32, #tpu.memory_space<vmem>>, vector<1x64xf32>
    %cst_12 = arith.constant dense<0.000000e+00> : vector<2x64xf32>
    %22 = tpu.matmul %19, %20, %cst_12 {dimension_numbers = #tpu.dot_dimension_numbers<[1], [0], [0], [1], [0, 0, 1, 1], [], []>, precision = #tpu.contract_precision<fp32>} : vector<2x64xf32>, vector<64x64xf32>, vector<2x64xf32> -> vector<2x64xf32>
    %23 = vector.broadcast %21 : vector<1x64xf32> to vector<2x64xf32>
    %24 = arith.addf %22, %23 : vector<2x64xf32>
    %cst_13 = arith.constant 0.000000e+00 : f32
    %25 = vector.broadcast %cst_13 : f32 to vector<2x64xf32>
    %26 = arith.maximumf %24, %25 : vector<2x64xf32>
    %27 = arith.addf %19, %26 : vector<2x64xf32>
    %c144 = arith.constant 144 : index
    %c0_14 = arith.constant 0 : index
    %28 = vector.load %arg2[%c144, %c0_14] : memref<208x64xf32, #tpu.memory_space<vmem>>, vector<64x64xf32>
    %c3 = arith.constant 3 : index
    %c0_15 = arith.constant 0 : index
    %29 = vector.load %arg3[%c3, %c0_15] : memref<4x64xf32, #tpu.memory_space<vmem>>, vector<1x64xf32>
    %cst_16 = arith.constant dense<0.000000e+00> : vector<2x64xf32>
    %30 = tpu.matmul %27, %28, %cst_16 {dimension_numbers = #tpu.dot_dimension_numbers<[1], [0], [0], [1], [0, 0, 1, 1], [], []>, precision = #tpu.contract_precision<fp32>} : vector<2x64xf32>, vector<64x64xf32>, vector<2x64xf32> -> vector<2x64xf32>
    %31 = vector.broadcast %29 : vector<1x64xf32> to vector<2x64xf32>
    %32 = arith.addf %30, %31 : vector<2x64xf32>
    %cst_17 = arith.constant 0.000000e+00 : f32
    %33 = vector.broadcast %cst_17 : f32 to vector<2x64xf32>
    %34 = arith.maximumf %32, %33 : vector<2x64xf32>
    %35 = vector.extract_strided_slice %34 {offsets = [0, 0], sizes = [2, 16], strides = [1, 1]} : vector<2x64xf32> to vector<2x16xf32>
    %c0_18 = arith.constant 0 : index
    %c0_19 = arith.constant 0 : index
    %36 = vector.load %arg4[%c0_18, %c0_19] : memref<2x16xf32, #tpu.memory_space<vmem>>, vector<2x16xf32>
    tpu.vector_store %arg4[%c0_18, %c0_19], %35 {strides = array<i32>} : memref<2x16xf32, #tpu.memory_space<vmem>>, vector<2x16xf32>,
    return
  }
  func.func @transform_0(%arg0: i32) -> (i32, i32) {
    %c0_i32 = arith.constant 0 : i32
    %c0_i32_0 = arith.constant 0 : i32
    return %arg0, %c0_i32 : i32, i32
  }
  func.func @transform_1(%arg0: i32) -> (i32, i32) {
    %c0_i32 = arith.constant 0 : i32
    %c0_i32_0 = arith.constant 0 : i32
    %c0_i32_1 = arith.constant 0 : i32
    return %c0_i32, %c0_i32_0 : i32, i32
  }
  func.func @transform_2(%arg0: i32) -> (i32, i32) {
    %c0_i32 = arith.constant 0 : i32
    %c0_i32_0 = arith.constant 0 : i32
    %c0_i32_1 = arith.constant 0 : i32
    return %c0_i32, %c0_i32_0 : i32, i32
  }
  func.func @transform_3(%arg0: i32) -> (i32, i32) {
    %c0_i32 = arith.constant 0 : i32
    %c0_i32_0 = arith.constant 0 : i32
    return %arg0, %c0_i32 : i32, i32
  }
}

</mosaic_0001>

<llo_original>
// kernel: tpu_custom_call.1
$region0: #{tpu_custom_call.1}
  #allocation0 [shape = 'u32[]', space=smem, size = 0x4, offset = 0x4, fixed_abs, tag = 'smem constant byte address 0x4 - core index']
  #allocation1 [shape = 'u32[72,128]{1,0:T(1,128)}', space=vmem, size = 0x9000, scoped, tag = 'internal scratch']
  %s0 = inlined_call_operand.vmem [shape: f32[2,16], index: 0, kind: input, shape index: {}]
  %s1 = inlined_call_operand.vmem [shape: f32[208,64], index: 1, kind: input, shape index: {}]
  %s2 = inlined_call_operand.vmem [shape: f32[4,64], index: 2, kind: input, shape index: {}]
  %s3 = inlined_call_operand.hbm [shape: f32[2,16], index: 3, kind: output, shape index: {}]
  %s4 = sld [smem:[#allocation0]]
  $region22: #{tpu_custom_call.1} parent=0
    _
  %s6 = ssub.s32 1, %s4
  %s7 = scalar_select 0, %s6, %s4
  $region1: #{tpu_custom_call.1} parent=0
    #allocation2 [shape = 'u8[1024]{0}', space=vmem, size = 0x400, scoped, tag = 'output window, operand 0, single buffered']
    #allocation3 [shape = 's32[1]{0}', space=sflag, size = 0x4, scoped, tag = 'scoped memory for tpu_custom_call.1']
    %8 = vsyncpa [#allocation3], 0
    // Predicated region
    $region2: #{tpu_custom_call.1} parent=1 // pred_check
      _
    $region3: #{tpu_custom_call.1} parent=1 // pred_check_branch
      %10 = sbr.rel (0) target = $region5
    $region4: #{tpu_custom_call.1} parent=1 // pred_region
      _
    $region5: #{tpu_custom_call.1} parent=1 // pred_fallthru
      _
    // Predicated region
    $region6: #{tpu_custom_call.1} parent=1 // pred_check
      _
    $region7: #{tpu_custom_call.1} parent=1 // pred_check_branch
      %12 = sbr.rel (0) target = $region9
    $region8: #{tpu_custom_call.1} parent=1 // pred_region
      _
    $region9: #{tpu_custom_call.1} parent=1 // pred_fallthru
      _
    // Predicated region
    $region10: #{tpu_custom_call.1} parent=1 // pred_check
      _
    $region11: #{tpu_custom_call.1} parent=1 // pred_check_branch
      %14 = sbr.rel (0) target = $region13
    $region12: #{tpu_custom_call.1} parent=1 // pred_region
      _
    $region13: #{tpu_custom_call.1} parent=1 // pred_fallthru
      _
    %v15 = vld [vmem:[%s0] sm:$0x3]
    %v16 = vld [vmem:[%s1] sm:$0xff]
    %v17 = vld [vmem:[%s1 + $0x8] sm:$0xff]
    %v18 = vld [vmem:[%s2] sm:$0x1]
    %v19 = vperm.slane %v18, 0
    %vm20 = vcmask 130048
    %v22 = vsel %vm20, %v15, 0
    %24 = vmatpush.msra.mxu0 0.0
    %25 = vmatpush.msra.mxu0 0.0
    %26 = vmatpush.msra.mxu0 0.0
    %27 = vmatpush.msra.mxu0 0.0
    %28 = vmatpush.msra.mxu0 0.0
    %29 = vmatpush.msra.mxu0 0.0
    %30 = vmatpush.msra.mxu0 0.0
    %31 = vmatpush.msra.mxu0 0.0
    %32 = vmatpush.msra.mxu0 0.0
    %33 = vmatpush.msra.mxu0 0.0
    %34 = vmatpush.msra.mxu0 0.0
    %35 = vmatpush.msra.mxu0 0.0
    %36 = vmatpush.msra.mxu0 0.0
    %37 = vmatpush.msra.mxu0 0.0
    %v38 = vand.u32 %v17, 4294901760
    %39 = vmatpush.msra.mxu0 %v38
    %v40 = vand.u32 %v16, 4294901760
    %41 = vmatpush.msra.mxu0 %v40
    %v42 = vand.u32 %v22, 4294901760
    %v43 = vsub.f32 %v22, %v42
    %v44 = vand.u32 %v43, 4294901760
    %v45 = vsub.f32 %v43, %v44
    %v46 = vand.u32 %v45, 4294901760
    %47 = vmatmul.f32.gmra.mxu0 %v46
    %v48 = vpop.f32.mrf.mxu0
    %v49 = vadd.f32 %v19, %v48
    %50 = vdwg.mxu0
    %51 = vmatpush.msra.mxu0 0.0
    %52 = vmatpush.msra.mxu0 0.0
    %53 = vmatpush.msra.mxu0 0.0
    %54 = vmatpush.msra.mxu0 0.0
    %55 = vmatpush.msra.mxu0 0.0
    %56 = vmatpush.msra.mxu0 0.0
    %57 = vmatpush.msra.mxu0 0.0
    %58 = vmatpush.msra.mxu0 0.0
    %59 = vmatpush.msra.mxu0 0.0
    %60 = vmatpush.msra.mxu0 0.0
    %61 = vmatpush.msra.mxu0 0.0
    %62 = vmatpush.msra.mxu0 0.0
    %63 = vmatpush.msra.mxu0 0.0
    %64 = vmatpush.msra.mxu0 0.0
    %v65 = vand.u32 %v17, 4294901760
    %v66 = vsub.f32 %v17, %v65
    %v67 = vand.u32 %v66, 4294901760
    %v68 = vsub.f32 %v66, %v67
    %v69 = vand.u32 %v68, 4294901760
    %70 = vmatpush.msra.mxu0 %v69
    %v71 = vand.u32 %v16, 4294901760
    %v72 = vsub.f32 %v16, %v71
    %v73 = vand.u32 %v72, 4294901760
    %v74 = vsub.f32 %v72, %v73
    %v75 = vand.u32 %v74, 4294901760
    %76 = vmatpush.msra.mxu0 %v75
    %v77 = vand.u32 %v22, 4294901760
    %78 = vmatmul.f32.gmra.mxu0 %v77
    %v79 = vpop.f32.mrf.mxu0
    %v80 = vadd.f32 %v49, %v79
    %81 = vdwg.mxu0
    %82 = vmatpush.msra.mxu0 0.0
    %83 = vmatpush.msra.mxu0 0.0
    %84 = vmatpush.msra.mxu0 0.0
    %85 = vmatpush.msra.mxu0 0.0
    %86 = vmatpush.msra.mxu0 0.0
    %87 = vmatpush.msra.mxu0 0.0
    %88 = vmatpush.msra.mxu0 0.0
    %89 = vmatpush.msra.mxu0 0.0
    %90 = vmatpush.msra.mxu0 0.0
    %91 = vmatpush.msra.mxu0 0.0
    %92 = vmatpush.msra.mxu0 0.0
    %93 = vmatpush.msra.mxu0 0.0
    %94 = vmatpush.msra.mxu0 0.0
    %95 = vmatpush.msra.mxu0 0.0
    %v96 = vand.u32 %v17, 4294901760
    %v97 = vsub.f32 %v17, %v96
    %98 = vmatpush.msra.mxu0 %v97
    %v99 = vand.u32 %v16, 4294901760
    %v100 = vsub.f32 %v16, %v99
    %101 = vmatpush.msra.mxu0 %v100
    %v102 = vand.u32 %v22, 4294901760
    %v103 = vsub.f32 %v22, %v102
    %104 = vmatmul.f32.gmra.mxu0 %v103
    %v105 = vpop.f32.mrf.mxu0
    %v106 = vadd.f32 %v80, %v105
    %107 = vdwg.mxu0
    %108 = vmatpush.msra.mxu0 0.0
    %109 = vmatpush.msra.mxu0 0.0
    %110 = vmatpush.msra.mxu0 0.0
    %111 = vmatpush.msra.mxu0 0.0
    %112 = vmatpush.msra.mxu0 0.0
    %113 = vmatpush.msra.mxu0 0.0
    %114 = vmatpush.msra.mxu0 0.0
    %115 = vmatpush.msra.mxu0 0.0
    %116 = vmatpush.msra.mxu0 0.0
    %117 = vmatpush.msra.mxu0 0.0
    %118 = vmatpush.msra.mxu0 0.0
    %119 = vmatpush.msra.mxu0 0.0
    %120 = vmatpush.msra.mxu0 0.0
    %121 = vmatpush.msra.mxu0 0.0
    %v122 = vand.u32 %v17, 4294901760
    %123 = vmatpush.msra.mxu0 %v122
    %v124 = vand.u32 %v16, 4294901760
    %125 = vmatpush.msra.mxu0 %v124
    %v126 = vand.u32 %v22, 4294901760
    %v127 = vsub.f32 %v22, %v126
    %v128 = vand.u32 %v127, 4294901760
    %129 = vmatmul.f32.gmra.mxu0 %v128
    %v130 = vpop.f32.mrf.mxu0
    %v131 = vadd.f32 %v106, %v130
    %132 = vdwg.mxu0
    %133 = vmatpush.msra.mxu0 0.0
    %134 = vmatpush.msra.mxu0 0.0
    %135 = vmatpush.msra.mxu0 0.0
    %136 = vmatpush.msra.mxu0 0.0
    %137 = vmatpush.msra.mxu0 0.0
    %138 = vmatpush.msra.mxu0 0.0
    %139 = vmatpush.msra.mxu0 0.0
    %140 = vmatpush.msra.mxu0 0.0
    %141 = vmatpush.msra.mxu0 0.0
    %142 = vmatpush.msra.mxu0 0.0
    %143 = vmatpush.msra.mxu0 0.0
    %144 = vmatpush.msra.mxu0 0.0
    %145 = vmatpush.msra.mxu0 0.0
    %146 = vmatpush.msra.mxu0 0.0
    %v147 = vand.u32 %v17, 4294901760
    %v148 = vsub.f32 %v17, %v147
    %v149 = vand.u32 %v148, 4294901760
    %150 = vmatpush.msra.mxu0 %v149
    %v151 = vand.u32 %v16, 4294901760
    %v152 = vsub.f32 %v16, %v151
    %v153 = vand.u32 %v152, 4294901760
    %154 = vmatpush.msra.mxu0 %v153
    %v155 = vand.u32 %v22, 4294901760
    %156 = vmatmul.f32.gmra.mxu0 %v155
    %v157 = vpop.f32.mrf.mxu0
    %v158 = vadd.f32 %v131, %v157
    %159 = vdwg.mxu0
    %160 = vmatpush.msra.mxu0 0.0
    %161 = vmatpush.msra.mxu0 0.0
    %162 = vmatpush.msra.mxu0 0.0
    %163 = vmatpush.msra.mxu0 0.0
    %164 = vmatpush.msra.mxu0 0.0
    %165 = vmatpush.msra.mxu0 0.0
    %166 = vmatpush.msra.mxu0 0.0
    %167 = vmatpush.msra.mxu0 0.0
    %168 = vmatpush.msra.mxu0 0.0
    %169 = vmatpush.msra.mxu0 0.0
    %170 = vmatpush.msra.mxu0 0.0
    %171 = vmatpush.msra.mxu0 0.0
    %172 = vmatpush.msra.mxu0 0.0
    %173 = vmatpush.msra.mxu0 0.0
    %v174 = vand.u32 %v17, 4294901760
    %175 = vmatpush.msra.mxu0 %v174
    %v176 = vand.u32 %v16, 4294901760
    %177 = vmatpush.msra.mxu0 %v176
    %v178 = vand.u32 %v22, 4294901760
    %179 = vmatmul.f32.gmra.mxu0 %v178
    %v180 = vpop.f32.mrf.mxu0
    %v181 = vadd.f32 %v158, %v180
    %182 = vdwg.mxu0
    %v183 = vlaneseq
    %v184 = vand.u32 %v183, 127
    %vm185 = vcmp.lt.s32.totalorder %v184, 32
    %v186 = vmax.f32 %v181, 0.0
    %v187 = vsel %vm185, %v186, %v181
    %v188 = vld [vmem:[%s1 + $0x10] sm:$0xff]
    %v189 = vld [vmem:[%s1 + $0x18] sm:$0xff]
    %v190 = vld [vmem:[%s1 + $0x20] sm:$0xff]
    %v191 = vld [vmem:[%s1 + $0x28] sm:$0xff]
    %v192 = vld [vmem:[%s1 + $0x30] sm:$0xff]
    %v193 = vld [vmem:[%s1 + $0x38] sm:$0xff]
    %v194 = vld [vmem:[%s1 + $0x40] sm:$0xff]
    %v195 = vld [vmem:[%s1 + $0x48] sm:$0xff]
    %v196 = vld [vmem:[%s2 + $0x1] sm:$0x1]
    %v197 = vperm.slane %v196, 0
    %vm198 = vcmask 523264
    %v200 = vsel %vm198, %v187, 0
    %202 = vmatpush.msra.mxu0 0.0
    %203 = vmatpush.msra.mxu0 0.0
    %204 = vmatpush.msra.mxu0 0.0
    %205 = vmatpush.msra.mxu0 0.0
    %206 = vmatpush.msra.mxu0 0.0
    %207 = vmatpush.msra.mxu0 0.0
    %208 = vmatpush.msra.mxu0 0.0
    %209 = vmatpush.msra.mxu0 0.0
    %v210 = vand.u32 %v195, 4294901760
    %211 = vmatpush.msra.mxu0 %v210
    %v212 = vand.u32 %v194, 4294901760
    %213 = vmatpush.msra.mxu0 %v212
    %v214 = vand.u32 %v193, 4294901760
    %215 = vmatpush.msra.mxu0 %v214
    %v216 = vand.u32 %v192, 4294901760
    %217 = vmatpush.msra.mxu0 %v216
    %v218 = vand.u32 %v191, 4294901760
    %219 = vmatpush.msra.mxu0 %v218
    %v220 = vand.u32 %v190, 4294901760
    %221 = vmatpush.msra.mxu0 %v220
    %v222 = vand.u32 %v189, 4294901760
    %223 = vmatpush.msra.mxu0 %v222
    %v224 = vand.u32 %v188, 4294901760
    %225 = vmatpush.msra.mxu0 %v224
    %v226 = vand.u32 %v200, 4294901760
    %v227 = vsub.f32 %v200, %v226
    %v228 = vand.u32 %v227, 4294901760
    %v229 = vsub.f32 %v227, %v228
    %v230 = vand.u32 %v229, 4294901760
    %231 = vmatmul.f32.gmra.mxu0 %v230
    %v232 = vpop.f32.mrf.mxu0
    %v233 = vadd.f32 %v197, %v232
    %234 = vdwg.mxu0
    %235 = vmatpush.msra.mxu0 0.0
    %236 = vmatpush.msra.mxu0 0.0
    %237 = vmatpush.msra.mxu0 0.0
    %238 = vmatpush.msra.mxu0 0.0
    %239 = vmatpush.msra.mxu0 0.0
    %240 = vmatpush.msra.mxu0 0.0
    %241 = vmatpush.msra.mxu0 0.0
    %242 = vmatpush.msra.mxu0 0.0
    %v243 = vand.u32 %v195, 4294901760
    %v244 = vsub.f32 %v195, %v243
    %v245 = vand.u32 %v244, 4294901760
    %v246 = vsub.f32 %v244, %v245
    %v247 = vand.u32 %v246, 4294901760
    %248 = vmatpush.msra.mxu0 %v247
    %v249 = vand.u32 %v194, 4294901760
    %v250 = vsub.f32 %v194, %v249
    %v251 = vand.u32 %v250, 4294901760
    %v252 = vsub.f32 %v250, %v251
    %v253 = vand.u32 %v252, 4294901760
    %254 = vmatpush.msra.mxu0 %v253
    %v255 = vand.u32 %v193, 4294901760
    %v256 = vsub.f32 %v193, %v255
    %v257 = vand.u32 %v256, 4294901760
    %v258 = vsub.f32 %v256, %v257
    %v259 = vand.u32 %v258, 4294901760
    %260 = vmatpush.msra.mxu0 %v259
    %v261 = vand.u32 %v192, 4294901760
    %v262 = vsub.f32 %v192, %v261
    %v263 = vand.u32 %v262, 4294901760
    %v264 = vsub.f32 %v262, %v263
    %v265 = vand.u32 %v264, 4294901760
    %266 = vmatpush.msra.mxu0 %v265
    %v267 = vand.u32 %v191, 4294901760
    %v268 = vsub.f32 %v191, %v267
    %v269 = vand.u32 %v268, 4294901760
    %v270 = vsub.f32 %v268, %v269
    %v271 = vand.u32 %v270, 4294901760
    %272 = vmatpush.msra.mxu0 %v271
    %v273 = vand.u32 %v190, 4294901760
    %v274 = vsub.f32 %v190, %v273
    %v275 = vand.u32 %v274, 4294901760
    %v276 = vsub.f32 %v274, %v275
    %v277 = vand.u32 %v276, 4294901760
    %278 = vmatpush.msra.mxu0 %v277
    %v279 = vand.u32 %v189, 4294901760
    %v280 = vsub.f32 %v189, %v279
    %v281 = vand.u32 %v280, 4294901760
    %v282 = vsub.f32 %v280, %v281
    %v283 = vand.u32 %v282, 4294901760
    %284 = vmatpush.msra.mxu0 %v283
    %v285 = vand.u32 %v188, 4294901760
    %v286 = vsub.f32 %v188, %v285
    %v287 = vand.u32 %v286, 4294901760
    %v288 = vsub.f32 %v286, %v287
    %v289 = vand.u32 %v288, 4294901760
    %290 = vmatpush.msra.mxu0 %v289
    %v291 = vand.u32 %v200, 4294901760
    %292 = vmatmul.f32.gmra.mxu0 %v291
    %v293 = vpop.f32.mrf.mxu0
    %v294 = vadd.f32 %v233, %v293
    %295 = vdwg.mxu0
    %296 = vmatpush.msra.mxu0 0.0
    %297 = vmatpush.msra.mxu0 0.0
    %298 = vmatpush.msra.mxu0 0.0
    %299 = vmatpush.msra.mxu0 0.0
    %300 = vmatpush.msra.mxu0 0.0
    %301 = vmatpush.msra.mxu0 0.0
    %302 = vmatpush.msra.mxu0 0.0
    %303 = vmatpush.msra.mxu0 0.0
    %v304 = vand.u32 %v195, 4294901760
    %v305 = vsub.f32 %v195, %v304
    %306 = vmatpush.msra.mxu0 %v305
    %v307 = vand.u32 %v194, 4294901760
    %v308 = vsub.f32 %v194, %v307
    %309 = vmatpush.msra.mxu0 %v308
    %v310 = vand.u32 %v193, 4294901760
    %v311 = vsub.f32 %v193, %v310
    %312 = vmatpush.msra.mxu0 %v311
    %v313 = vand.u32 %v192, 4294901760
    %v314 = vsub.f32 %v192, %v313
    %315 = vmatpush.msra.mxu0 %v314
    %v316 = vand.u32 %v191, 4294901760
    %v317 = vsub.f32 %v191, %v316
    %318 = vmatpush.msra.mxu0 %v317
    %v319 = vand.u32 %v190, 4294901760
    %v320 = vsub.f32 %v190, %v319
    %321 = vmatpush.msra.mxu0 %v320
    %v322 = vand.u32 %v189, 4294901760
    %v323 = vsub.f32 %v189, %v322
    %324 = vmatpush.msra.mxu0 %v323
    %v325 = vand.u32 %v188, 4294901760
    %v326 = vsub.f32 %v188, %v325
    %327 = vmatpush.msra.mxu0 %v326
    %v328 = vand.u32 %v200, 4294901760
    %v329 = vsub.f32 %v200, %v328
    %330 = vmatmul.f32.gmra.mxu0 %v329
    %v331 = vpop.f32.mrf.mxu0
    %v332 = vadd.f32 %v294, %v331
    %333 = vdwg.mxu0
    %334 = vmatpush.msra.mxu0 0.0
    %335 = vmatpush.msra.mxu0 0.0
    %336 = vmatpush.msra.mxu0 0.0
    %337 = vmatpush.msra.mxu0 0.0
    %338 = vmatpush.msra.mxu0 0.0
    %339 = vmatpush.msra.mxu0 0.0
    %340 = vmatpush.msra.mxu0 0.0
    %341 = vmatpush.msra.mxu0 0.0
    %v342 = vand.u32 %v195, 4294901760
    %343 = vmatpush.msra.mxu0 %v342
    %v344 = vand.u32 %v194, 4294901760
    %345 = vmatpush.msra.mxu0 %v344
    %v346 = vand.u32 %v193, 4294901760
    %347 = vmatpush.msra.mxu0 %v346
    %v348 = vand.u32 %v192, 4294901760
    %349 = vmatpush.msra.mxu0 %v348
    %v350 = vand.u32 %v191, 4294901760
    %351 = vmatpush.msra.mxu0 %v350
    %v352 = vand.u32 %v190, 4294901760
    %353 = vmatpush.msra.mxu0 %v352
    %v354 = vand.u32 %v189, 4294901760
    %355 = vmatpush.msra.mxu0 %v354
    %v356 = vand.u32 %v188, 4294901760
    %357 = vmatpush.msra.mxu0 %v356
    %v358 = vand.u32 %v200, 4294901760
    %v359 = vsub.f32 %v200, %v358
    %v360 = vand.u32 %v359, 4294901760
    %361 = vmatmul.f32.gmra.mxu0 %v360
    %v362 = vpop.f32.mrf.mxu0
    %v363 = vadd.f32 %v332, %v362
    %364 = vdwg.mxu0
    %365 = vmatpush.msra.mxu0 0.0
    %366 = vmatpush.msra.mxu0 0.0
    %367 = vmatpush.msra.mxu0 0.0
    %368 = vmatpush.msra.mxu0 0.0
    %369 = vmatpush.msra.mxu0 0.0
    %370 = vmatpush.msra.mxu0 0.0
    %371 = vmatpush.msra.mxu0 0.0
    %372 = vmatpush.msra.mxu0 0.0
    %v373 = vand.u32 %v195, 4294901760
    %v374 = vsub.f32 %v195, %v373
    %v375 = vand.u32 %v374, 4294901760
    %376 = vmatpush.msra.mxu0 %v375
    %v377 = vand.u32 %v194, 4294901760
    %v378 = vsub.f32 %v194, %v377
    %v379 = vand.u32 %v378, 4294901760
    %380 = vmatpush.msra.mxu0 %v379
    %v381 = vand.u32 %v193, 4294901760
    %v382 = vsub.f32 %v193, %v381
    %v383 = vand.u32 %v382, 4294901760
    %384 = vmatpush.msra.mxu0 %v383
    %v385 = vand.u32 %v192, 4294901760
    %v386 = vsub.f32 %v192, %v385
    %v387 = vand.u32 %v386, 4294901760
    %388 = vmatpush.msra.mxu0 %v387
    %v389 = vand.u32 %v191, 4294901760
    %v390 = vsub.f32 %v191, %v389
    %v391 = vand.u32 %v390, 4294901760
    %392 = vmatpush.msra.mxu0 %v391
    %v393 = vand.u32 %v190, 4294901760
    %v394 = vsub.f32 %v190, %v393
    %v395 = vand.u32 %v394, 4294901760
    %396 = vmatpush.msra.mxu0 %v395
    %v397 = vand.u32 %v189, 4294901760
    %v398 = vsub.f32 %v189, %v397
    %v399 = vand.u32 %v398, 4294901760
    %400 = vmatpush.msra.mxu0 %v399
    %v401 = vand.u32 %v188, 4294901760
    %v402 = vsub.f32 %v188, %v401
    %v403 = vand.u32 %v402, 4294901760
    %404 = vmatpush.msra.mxu0 %v403
    %v405 = vand.u32 %v200, 4294901760
    %406 = vmatmul.f32.gmra.mxu0 %v405
    %v407 = vpop.f32.mrf.mxu0
    %v408 = vadd.f32 %v363, %v407
    %409 = vdwg.mxu0
    %410 = vmatpush.msra.mxu0 0.0
    %411 = vmatpush.msra.mxu0 0.0
    %412 = vmatpush.msra.mxu0 0.0
    %413 = vmatpush.msra.mxu0 0.0
    %414 = vmatpush.msra.mxu0 0.0
    %415 = vmatpush.msra.mxu0 0.0
    %416 = vmatpush.msra.mxu0 0.0
    %417 = vmatpush.msra.mxu0 0.0
    %v418 = vand.u32 %v195, 4294901760
    %419 = vmatpush.msra.mxu0 %v418
    %v420 = vand.u32 %v194, 4294901760
    %421 = vmatpush.msra.mxu0 %v420
    %v422 = vand.u32 %v193, 4294901760
    %423 = vmatpush.msra.mxu0 %v422
    %v424 = vand.u32 %v192, 4294901760
    %425 = vmatpush.msra.mxu0 %v424
    %v426 = vand.u32 %v191, 4294901760
    %427 = vmatpush.msra.mxu0 %v426
    %v428 = vand.u32 %v190, 4294901760
    %429 = vmatpush.msra.mxu0 %v428
    %v430 = vand.u32 %v189, 4294901760
    %431 = vmatpush.msra.mxu0 %v430
    %v432 = vand.u32 %v188, 4294901760
    %433 = vmatpush.msra.mxu0 %v432
    %v434 = vand.u32 %v200, 4294901760
    %435 = vmatmul.f32.gmra.mxu0 %v434
    %v436 = vpop.f32.mrf.mxu0
    %v437 = vadd.f32 %v408, %v436
    %438 = vdwg.mxu0
    %v439 = vmax.f32 %v437, 0.0
    %v440 = vadd.f32 %v187, %v439
    %v441 = vld [vmem:[%s1 + $0x50] sm:$0xff]
    %v442 = vld [vmem:[%s1 + $0x58] sm:$0xff]
    %v443 = vld [vmem:[%s1 + $0x60] sm:$0xff]
    %v444 = vld [vmem:[%s1 + $0x68] sm:$0xff]
    %v445 = vld [vmem:[%s1 + $0x70] sm:$0xff]
    %v446 = vld [vmem:[%s1 + $0x78] sm:$0xff]
    %v447 = vld [vmem:[%s1 + $0x80] sm:$0xff]
    %v448 = vld [vmem:[%s1 + $0x88] sm:$0xff]
    %v449 = vld [vmem:[%s2 + $0x2] sm:$0x1]
    %v450 = vperm.slane %v449, 0
    %v452 = vsel %vm198, %v440, 0
    %454 = vmatpush.msra.mxu0 0.0
    %455 = vmatpush.msra.mxu0 0.0
    %456 = vmatpush.msra.mxu0 0.0
    %457 = vmatpush.msra.mxu0 0.0
    %458 = vmatpush.msra.mxu0 0.0
    %459 = vmatpush.msra.mxu0 0.0
    %460 = vmatpush.msra.mxu0 0.0
    %461 = vmatpush.msra.mxu0 0.0
    %v462 = vand.u32 %v448, 4294901760
    %463 = vmatpush.msra.mxu0 %v462
    %v464 = vand.u32 %v447, 4294901760
    %465 = vmatpush.msra.mxu0 %v464
    %v466 = vand.u32 %v446, 4294901760
    %467 = vmatpush.msra.mxu0 %v466
    %v468 = vand.u32 %v445, 4294901760
    %469 = vmatpush.msra.mxu0 %v468
    %v470 = vand.u32 %v444, 4294901760
    %471 = vmatpush.msra.mxu0 %v470
    %v472 = vand.u32 %v443, 4294901760
    %473 = vmatpush.msra.mxu0 %v472
    %v474 = vand.u32 %v442, 4294901760
    %475 = vmatpush.msra.mxu0 %v474
    %v476 = vand.u32 %v441, 4294901760
    %477 = vmatpush.msra.mxu0 %v476
    %v478 = vand.u32 %v452, 4294901760
    %v479 = vsub.f32 %v452, %v478
    %v480 = vand.u32 %v479, 4294901760
    %v481 = vsub.f32 %v479, %v480
    %v482 = vand.u32 %v481, 4294901760
    %483 = vmatmul.f32.gmra.mxu0 %v482
    %v484 = vpop.f32.mrf.mxu0
    %v485 = vadd.f32 %v450, %v484
    %486 = vdwg.mxu0
    %487 = vmatpush.msra.mxu0 0.0
    %488 = vmatpush.msra.mxu0 0.0
    %489 = vmatpush.msra.mxu0 0.0
    %490 = vmatpush.msra.mxu0 0.0
    %491 = vmatpush.msra.mxu0 0.0
    %492 = vmatpush.msra.mxu0 0.0
    %493 = vmatpush.msra.mxu0 0.0
    %494 = vmatpush.msra.mxu0 0.0
    %v495 = vand.u32 %v448, 4294901760
    %v496 = vsub.f32 %v448, %v495
    %v497 = vand.u32 %v496, 4294901760
    %v498 = vsub.f32 %v496, %v497
    %v499 = vand.u32 %v498, 4294901760
    %500 = vmatpush.msra.mxu0 %v499
    %v501 = vand.u32 %v447, 4294901760
    %v502 = vsub.f32 %v447, %v501
    %v503 = vand.u32 %v502, 4294901760
    %v504 = vsub.f32 %v502, %v503
    %v505 = vand.u32 %v504, 4294901760
    %506 = vmatpush.msra.mxu0 %v505
    %v507 = vand.u32 %v446, 4294901760
    %v508 = vsub.f32 %v446, %v507
    %v509 = vand.u32 %v508, 4294901760
    %v510 = vsub.f32 %v508, %v509
    %v511 = vand.u32 %v510, 4294901760
    %512 = vmatpush.msra.mxu0 %v511
    %v513 = vand.u32 %v445, 4294901760
    %v514 = vsub.f32 %v445, %v513
    %v515 = vand.u32 %v514, 4294901760
    %v516 = vsub.f32 %v514, %v515
    %v517 = vand.u32 %v516, 4294901760
    %518 = vmatpush.msra.mxu0 %v517
    %v519 = vand.u32 %v444, 4294901760
    %v520 = vsub.f32 %v444, %v519
    %v521 = vand.u32 %v520, 4294901760
    %v522 = vsub.f32 %v520, %v521
    %v523 = vand.u32 %v522, 4294901760
    %524 = vmatpush.msra.mxu0 %v523
    %v525 = vand.u32 %v443, 4294901760
    %v526 = vsub.f32 %v443, %v525
    %v527 = vand.u32 %v526, 4294901760
    %v528 = vsub.f32 %v526, %v527
    %v529 = vand.u32 %v528, 4294901760
    %530 = vmatpush.msra.mxu0 %v529
    %v531 = vand.u32 %v442, 4294901760
    %v532 = vsub.f32 %v442, %v531
    %v533 = vand.u32 %v532, 4294901760
    %v534 = vsub.f32 %v532, %v533
    %v535 = vand.u32 %v534, 4294901760
    %536 = vmatpush.msra.mxu0 %v535
    %v537 = vand.u32 %v441, 4294901760
    %v538 = vsub.f32 %v441, %v537
    %v539 = vand.u32 %v538, 4294901760
    %v540 = vsub.f32 %v538, %v539
    %v541 = vand.u32 %v540, 4294901760
    %542 = vmatpush.msra.mxu0 %v541
    %v543 = vand.u32 %v452, 4294901760
    %544 = vmatmul.f32.gmra.mxu0 %v543
    %v545 = vpop.f32.mrf.mxu0
    %v546 = vadd.f32 %v485, %v545
    %547 = vdwg.mxu0
    %548 = vmatpush.msra.mxu0 0.0
    %549 = vmatpush.msra.mxu0 0.0
    %550 = vmatpush.msra.mxu0 0.0
    %551 = vmatpush.msra.mxu0 0.0
    %552 = vmatpush.msra.mxu0 0.0
    %553 = vmatpush.msra.mxu0 0.0
    %554 = vmatpush.msra.mxu0 0.0
    %555 = vmatpush.msra.mxu0 0.0
    %v556 = vand.u32 %v448, 4294901760
    %v557 = vsub.f32 %v448, %v556
    %558 = vmatpush.msra.mxu0 %v557
    %v559 = vand.u32 %v447, 4294901760
    %v560 = vsub.f32 %v447, %v559
    %561 = vmatpush.msra.mxu0 %v560
    %v562 = vand.u32 %v446, 4294901760
    %v563 = vsub.f32 %v446, %v562
    %564 = vmatpush.msra.mxu0 %v563
    %v565 = vand.u32 %v445, 4294901760
    %v566 = vsub.f32 %v445, %v565
    %567 = vmatpush.msra.mxu0 %v566
    %v568 = vand.u32 %v444, 4294901760
    %v569 = vsub.f32 %v444, %v568
    %570 = vmatpush.msra.mxu0 %v569
    %v571 = vand.u32 %v443, 4294901760
    %v572 = vsub.f32 %v443, %v571
    %573 = vmatpush.msra.mxu0 %v572
    %v574 = vand.u32 %v442, 4294901760
    %v575 = vsub.f32 %v442, %v574
    %576 = vmatpush.msra.mxu0 %v575
    %v577 = vand.u32 %v441, 4294901760
    %v578 = vsub.f32 %v441, %v577
    %579 = vmatpush.msra.mxu0 %v578
    %v580 = vand.u32 %v452, 4294901760
    %v581 = vsub.f32 %v452, %v580
    %582 = vmatmul.f32.gmra.mxu0 %v581
    %v583 = vpop.f32.mrf.mxu0
    %v584 = vadd.f32 %v546, %v583
    %585 = vdwg.mxu0
    %586 = vmatpush.msra.mxu0 0.0
    %587 = vmatpush.msra.mxu0 0.0
    %588 = vmatpush.msra.mxu0 0.0
    %589 = vmatpush.msra.mxu0 0.0
    %590 = vmatpush.msra.mxu0 0.0
    %591 = vmatpush.msra.mxu0 0.0
    %592 = vmatpush.msra.mxu0 0.0
    %593 = vmatpush.msra.mxu0 0.0
    %v594 = vand.u32 %v448, 4294901760
    %595 = vmatpush.msra.mxu0 %v594
    %v596 = vand.u32 %v447, 4294901760
    %597 = vmatpush.msra.mxu0 %v596
    %v598 = vand.u32 %v446, 4294901760
    %599 = vmatpush.msra.mxu0 %v598
    %v600 = vand.u32 %v445, 4294901760
    %601 = vmatpush.msra.mxu0 %v600
    %v602 = vand.u32 %v444, 4294901760
    %603 = vmatpush.msra.mxu0 %v602
    %v604 = vand.u32 %v443, 4294901760
    %605 = vmatpush.msra.mxu0 %v604
    %v606 = vand.u32 %v442, 4294901760
    %607 = vmatpush.msra.mxu0 %v606
    %v608 = vand.u32 %v441, 4294901760
    %609 = vmatpush.msra.mxu0 %v608
    %v610 = vand.u32 %v452, 4294901760
    %v611 = vsub.f32 %v452, %v610
    %v612 = vand.u32 %v611, 4294901760
    %613 = vmatmul.f32.gmra.mxu0 %v612
    %v614 = vpop.f32.mrf.mxu0
    %v615 = vadd.f32 %v584, %v614
    %616 = vdwg.mxu0
    %617 = vmatpush.msra.mxu0 0.0
    %618 = vmatpush.msra.mxu0 0.0
    %619 = vmatpush.msra.mxu0 0.0
    %620 = vmatpush.msra.mxu0 0.0
    %621 = vmatpush.msra.mxu0 0.0
    %622 = vmatpush.msra.mxu0 0.0
    %623 = vmatpush.msra.mxu0 0.0
    %624 = vmatpush.msra.mxu0 0.0
    %v625 = vand.u32 %v448, 4294901760
    %v626 = vsub.f32 %v448, %v625
    %v627 = vand.u32 %v626, 4294901760
    %628 = vmatpush.msra.mxu0 %v627
    %v629 = vand.u32 %v447, 4294901760
    %v630 = vsub.f32 %v447, %v629
    %v631 = vand.u32 %v630, 4294901760
    %632 = vmatpush.msra.mxu0 %v631
    %v633 = vand.u32 %v446, 4294901760
    %v634 = vsub.f32 %v446, %v633
    %v635 = vand.u32 %v634, 4294901760
    %636 = vmatpush.msra.mxu0 %v635
    %v637 = vand.u32 %v445, 4294901760
    %v638 = vsub.f32 %v445, %v637
    %v639 = vand.u32 %v638, 4294901760
    %640 = vmatpush.msra.mxu0 %v639
    %v641 = vand.u32 %v444, 4294901760
    %v642 = vsub.f32 %v444, %v641
    %v643 = vand.u32 %v642, 4294901760
    %644 = vmatpush.msra.mxu0 %v643
    %v645 = vand.u32 %v443, 4294901760
    %v646 = vsub.f32 %v443, %v645
    %v647 = vand.u32 %v646, 4294901760
    %648 = vmatpush.msra.mxu0 %v647
    %v649 = vand.u32 %v442, 4294901760
    %v650 = vsub.f32 %v442, %v649
    %v651 = vand.u32 %v650, 4294901760
    %652 = vmatpush.msra.mxu0 %v651
    %v653 = vand.u32 %v441, 4294901760
    %v654 = vsub.f32 %v441, %v653
    %v655 = vand.u32 %v654, 4294901760
    %656 = vmatpush.msra.mxu0 %v655
    %v657 = vand.u32 %v452, 4294901760
    %658 = vmatmul.f32.gmra.mxu0 %v657
    %v659 = vpop.f32.mrf.mxu0
    %v660 = vadd.f32 %v615, %v659
    %661 = vdwg.mxu0
    %662 = vmatpush.msra.mxu0 0.0
    %663 = vmatpush.msra.mxu0 0.0
    %664 = vmatpush.msra.mxu0 0.0
    %665 = vmatpush.msra.mxu0 0.0
    %666 = vmatpush.msra.mxu0 0.0
    %667 = vmatpush.msra.mxu0 0.0
    %668 = vmatpush.msra.mxu0 0.0
    %669 = vmatpush.msra.mxu0 0.0
    %v670 = vand.u32 %v448, 4294901760
    %671 = vmatpush.msra.mxu0 %v670
    %v672 = vand.u32 %v447, 4294901760
    %673 = vmatpush.msra.mxu0 %v672
    %v674 = vand.u32 %v446, 4294901760
    %675 = vmatpush.msra.mxu0 %v674
    %v676 = vand.u32 %v445, 4294901760
    %677 = vmatpush.msra.mxu0 %v676
    %v678 = vand.u32 %v444, 4294901760
    %679 = vmatpush.msra.mxu0 %v678
    %v680 = vand.u32 %v443, 4294901760
    %681 = vmatpush.msra.mxu0 %v680
    %v682 = vand.u32 %v442, 4294901760
    %683 = vmatpush.msra.mxu0 %v682
    %v684 = vand.u32 %v441, 4294901760
    %685 = vmatpush.msra.mxu0 %v684
    %v686 = vand.u32 %v452, 4294901760
    %687 = vmatmul.f32.gmra.mxu0 %v686
    %v688 = vpop.f32.mrf.mxu0
    %v689 = vadd.f32 %v660, %v688
    %690 = vdwg.mxu0
    %v691 = vmax.f32 %v689, 0.0
    %v692 = vadd.f32 %v440, %v691
    %v693 = vld [vmem:[%s1 + $0x90] sm:$0xff]
    %v694 = vld [vmem:[%s1 + $0x98] sm:$0xff]
    %v695 = vld [vmem:[%s1 + $0xa0] sm:$0xff]
    %v696 = vld [vmem:[%s1 + $0xa8] sm:$0xff]
    %v697 = vld [vmem:[%s1 + $0xb0] sm:$0xff]
    %v698 = vld [vmem:[%s1 + $0xb8] sm:$0xff]
    %v699 = vld [vmem:[%s1 + $0xc0] sm:$0xff]
    %v700 = vld [vmem:[%s1 + $0xc8] sm:$0xff]
    %v701 = vld [vmem:[%s2 + $0x3] sm:$0x1]
    %v702 = vperm.slane %v701, 0
    %v704 = vsel %vm198, %v692, 0
    %706 = vmatpush.msra.mxu0 0.0
    %707 = vmatpush.msra.mxu0 0.0
    %708 = vmatpush.msra.mxu0 0.0
    %709 = vmatpush.msra.mxu0 0.0
    %710 = vmatpush.msra.mxu0 0.0
    %711 = vmatpush.msra.mxu0 0.0
    %712 = vmatpush.msra.mxu0 0.0
    %713 = vmatpush.msra.mxu0 0.0
    %v714 = vand.u32 %v700, 4294901760
    %715 = vmatpush.msra.mxu0 %v714
    %v716 = vand.u32 %v699, 4294901760
    %717 = vmatpush.msra.mxu0 %v716
    %v718 = vand.u32 %v698, 4294901760
    %719 = vmatpush.msra.mxu0 %v718
    %v720 = vand.u32 %v697, 4294901760
    %721 = vmatpush.msra.mxu0 %v720
    %v722 = vand.u32 %v696, 4294901760
    %723 = vmatpush.msra.mxu0 %v722
    %v724 = vand.u32 %v695, 4294901760
    %725 = vmatpush.msra.mxu0 %v724
    %v726 = vand.u32 %v694, 4294901760
    %727 = vmatpush.msra.mxu0 %v726
    %v728 = vand.u32 %v693, 4294901760
    %729 = vmatpush.msra.mxu0 %v728
    %v730 = vand.u32 %v704, 4294901760
    %v731 = vsub.f32 %v704, %v730
    %v732 = vand.u32 %v731, 4294901760
    %v733 = vsub.f32 %v731, %v732
    %v734 = vand.u32 %v733, 4294901760
    %735 = vmatmul.f32.gmra.mxu0 %v734
    %v736 = vpop.f32.mrf.mxu0
    %v737 = vadd.f32 %v702, %v736
    %738 = vdwg.mxu0
    %739 = vmatpush.msra.mxu0 0.0
    %740 = vmatpush.msra.mxu0 0.0
    %741 = vmatpush.msra.mxu0 0.0
    %742 = vmatpush.msra.mxu0 0.0
    %743 = vmatpush.msra.mxu0 0.0
    %744 = vmatpush.msra.mxu0 0.0
    %745 = vmatpush.msra.mxu0 0.0
    %746 = vmatpush.msra.mxu0 0.0
    %v747 = vand.u32 %v700, 4294901760
    %v748 = vsub.f32 %v700, %v747
    %v749 = vand.u32 %v748, 4294901760
    %v750 = vsub.f32 %v748, %v749
    %v751 = vand.u32 %v750, 4294901760
    %752 = vmatpush.msra.mxu0 %v751
    %v753 = vand.u32 %v699, 4294901760
    %v754 = vsub.f32 %v699, %v753
    %v755 = vand.u32 %v754, 4294901760
    %v756 = vsub.f32 %v754, %v755
    %v757 = vand.u32 %v756, 4294901760
    %758 = vmatpush.msra.mxu0 %v757
    %v759 = vand.u32 %v698, 4294901760
    %v760 = vsub.f32 %v698, %v759
    %v761 = vand.u32 %v760, 4294901760
    %v762 = vsub.f32 %v760, %v761
    %v763 = vand.u32 %v762, 4294901760
    %764 = vmatpush.msra.mxu0 %v763
    %v765 = vand.u32 %v697, 4294901760
    %v766 = vsub.f32 %v697, %v765
    %v767 = vand.u32 %v766, 4294901760
    %v768 = vsub.f32 %v766, %v767
    %v769 = vand.u32 %v768, 4294901760
    %770 = vmatpush.msra.mxu0 %v769
    %v771 = vand.u32 %v696, 4294901760
    %v772 = vsub.f32 %v696, %v771
    %v773 = vand.u32 %v772, 4294901760
    %v774 = vsub.f32 %v772, %v773
    %v775 = vand.u32 %v774, 4294901760
    %776 = vmatpush.msra.mxu0 %v775
    %v777 = vand.u32 %v695, 4294901760
    %v778 = vsub.f32 %v695, %v777
    %v779 = vand.u32 %v778, 4294901760
    %v780 = vsub.f32 %v778, %v779
    %v781 = vand.u32 %v780, 4294901760
    %782 = vmatpush.msra.mxu0 %v781
    %v783 = vand.u32 %v694, 4294901760
    %v784 = vsub.f32 %v694, %v783
    %v785 = vand.u32 %v784, 4294901760
    %v786 = vsub.f32 %v784, %v785
    %v787 = vand.u32 %v786, 4294901760
    %788 = vmatpush.msra.mxu0 %v787
    %v789 = vand.u32 %v693, 4294901760
    %v790 = vsub.f32 %v693, %v789
    %v791 = vand.u32 %v790, 4294901760
    %v792 = vsub.f32 %v790, %v791
    %v793 = vand.u32 %v792, 4294901760
    %794 = vmatpush.msra.mxu0 %v793
    %v795 = vand.u32 %v704, 4294901760
    %796 = vmatmul.f32.gmra.mxu0 %v795
    %v797 = vpop.f32.mrf.mxu0
    %v798 = vadd.f32 %v737, %v797
    %799 = vdwg.mxu0
    %800 = vmatpush.msra.mxu0 0.0
    %801 = vmatpush.msra.mxu0 0.0
    %802 = vmatpush.msra.mxu0 0.0
    %803 = vmatpush.msra.mxu0 0.0
    %804 = vmatpush.msra.mxu0 0.0
    %805 = vmatpush.msra.mxu0 0.0
    %806 = vmatpush.msra.mxu0 0.0
    %807 = vmatpush.msra.mxu0 0.0
    %v808 = vand.u32 %v700, 4294901760
    %v809 = vsub.f32 %v700, %v808
    %810 = vmatpush.msra.mxu0 %v809
    %v811 = vand.u32 %v699, 4294901760
    %v812 = vsub.f32 %v699, %v811
    %813 = vmatpush.msra.mxu0 %v812
    %v814 = vand.u32 %v698, 4294901760
    %v815 = vsub.f32 %v698, %v814
    %816 = vmatpush.msra.mxu0 %v815
    %v817 = vand.u32 %v697, 4294901760
    %v818 = vsub.f32 %v697, %v817
    %819 = vmatpush.msra.mxu0 %v818
    %v820 = vand.u32 %v696, 4294901760
    %v821 = vsub.f32 %v696, %v820
    %822 = vmatpush.msra.mxu0 %v821
    %v823 = vand.u32 %v695, 4294901760
    %v824 = vsub.f32 %v695, %v823
    %825 = vmatpush.msra.mxu0 %v824
    %v826 = vand.u32 %v694, 4294901760
    %v827 = vsub.f32 %v694, %v826
    %828 = vmatpush.msra.mxu0 %v827
    %v829 = vand.u32 %v693, 4294901760
    %v830 = vsub.f32 %v693, %v829
    %831 = vmatpush.msra.mxu0 %v830
    %v832 = vand.u32 %v704, 4294901760
    %v833 = vsub.f32 %v704, %v832
    %834 = vmatmul.f32.gmra.mxu0 %v833
    %v835 = vpop.f32.mrf.mxu0
    %v836 = vadd.f32 %v798, %v835
    %837 = vdwg.mxu0
    %838 = vmatpush.msra.mxu0 0.0
    %839 = vmatpush.msra.mxu0 0.0
    %840 = vmatpush.msra.mxu0 0.0
    %841 = vmatpush.msra.mxu0 0.0
    %842 = vmatpush.msra.mxu0 0.0
    %843 = vmatpush.msra.mxu0 0.0
    %844 = vmatpush.msra.mxu0 0.0
    %845 = vmatpush.msra.mxu0 0.0
    %v846 = vand.u32 %v700, 4294901760
    %847 = vmatpush.msra.mxu0 %v846
    %v848 = vand.u32 %v699, 4294901760
    %849 = vmatpush.msra.mxu0 %v848
    %v850 = vand.u32 %v698, 4294901760
    %851 = vmatpush.msra.mxu0 %v850
    %v852 = vand.u32 %v697, 4294901760
    %853 = vmatpush.msra.mxu0 %v852
    %v854 = vand.u32 %v696, 4294901760
    %855 = vmatpush.msra.mxu0 %v854
    %v856 = vand.u32 %v695, 4294901760
    %857 = vmatpush.msra.mxu0 %v856
    %v858 = vand.u32 %v694, 4294901760
    %859 = vmatpush.msra.mxu0 %v858
    %v860 = vand.u32 %v693, 4294901760
    %861 = vmatpush.msra.mxu0 %v860
    %v862 = vand.u32 %v704, 4294901760
    %v863 = vsub.f32 %v704, %v862
    %v864 = vand.u32 %v863, 4294901760
    %865 = vmatmul.f32.gmra.mxu0 %v864
    %v866 = vpop.f32.mrf.mxu0
    %v867 = vadd.f32 %v836, %v866
    %868 = vdwg.mxu0
    %869 = vmatpush.msra.mxu0 0.0
    %870 = vmatpush.msra.mxu0 0.0
    %871 = vmatpush.msra.mxu0 0.0
    %872 = vmatpush.msra.mxu0 0.0
    %873 = vmatpush.msra.mxu0 0.0
    %874 = vmatpush.msra.mxu0 0.0
    %875 = vmatpush.msra.mxu0 0.0
    %876 = vmatpush.msra.mxu0 0.0
    %v877 = vand.u32 %v700, 4294901760
    %v878 = vsub.f32 %v700, %v877
    %v879 = vand.u32 %v878, 4294901760
    %880 = vmatpush.msra.mxu0 %v879
    %v881 = vand.u32 %v699, 4294901760
    %v882 = vsub.f32 %v699, %v881
    %v883 = vand.u32 %v882, 4294901760
    %884 = vmatpush.msra.mxu0 %v883
    %v885 = vand.u32 %v698, 4294901760
    %v886 = vsub.f32 %v698, %v885
    %v887 = vand.u32 %v886, 4294901760
    %888 = vmatpush.msra.mxu0 %v887
    %v889 = vand.u32 %v697, 4294901760
    %v890 = vsub.f32 %v697, %v889
    %v891 = vand.u32 %v890, 4294901760
    %892 = vmatpush.msra.mxu0 %v891
    %v893 = vand.u32 %v696, 4294901760
    %v894 = vsub.f32 %v696, %v893
    %v895 = vand.u32 %v894, 4294901760
    %896 = vmatpush.msra.mxu0 %v895
    %v897 = vand.u32 %v695, 4294901760
    %v898 = vsub.f32 %v695, %v897
    %v899 = vand.u32 %v898, 4294901760
    %900 = vmatpush.msra.mxu0 %v899
    %v901 = vand.u32 %v694, 4294901760
    %v902 = vsub.f32 %v694, %v901
    %v903 = vand.u32 %v902, 4294901760
    %904 = vmatpush.msra.mxu0 %v903
    %v905 = vand.u32 %v693, 4294901760
    %v906 = vsub.f32 %v693, %v905
    %v907 = vand.u32 %v906, 4294901760
    %908 = vmatpush.msra.mxu0 %v907
    %v909 = vand.u32 %v704, 4294901760
    %910 = vmatmul.f32.gmra.mxu0 %v909
    %v911 = vpop.f32.mrf.mxu0
    %v912 = vadd.f32 %v867, %v911
    %913 = vdwg.mxu0
    %914 = vmatpush.msra.mxu0 0.0
    %915 = vmatpush.msra.mxu0 0.0
    %916 = vmatpush.msra.mxu0 0.0
    %917 = vmatpush.msra.mxu0 0.0
    %918 = vmatpush.msra.mxu0 0.0
    %919 = vmatpush.msra.mxu0 0.0
    %920 = vmatpush.msra.mxu0 0.0
    %921 = vmatpush.msra.mxu0 0.0
    %v922 = vand.u32 %v700, 4294901760
    %923 = vmatpush.msra.mxu0 %v922
    %v924 = vand.u32 %v699, 4294901760
    %925 = vmatpush.msra.mxu0 %v924
    %v926 = vand.u32 %v698, 4294901760
    %927 = vmatpush.msra.mxu0 %v926
    %v928 = vand.u32 %v697, 4294901760
    %929 = vmatpush.msra.mxu0 %v928
    %v930 = vand.u32 %v696, 4294901760
    %931 = vmatpush.msra.mxu0 %v930
    %v932 = vand.u32 %v695, 4294901760
    %933 = vmatpush.msra.mxu0 %v932
    %v934 = vand.u32 %v694, 4294901760
    %935 = vmatpush.msra.mxu0 %v934
    %v936 = vand.u32 %v693, 4294901760
    %937 = vmatpush.msra.mxu0 %v936
    %v938 = vand.u32 %v704, 4294901760
    %939 = vmatmul.f32.gmra.mxu0 %v938
    %v940 = vpop.f32.mrf.mxu0
    %v941 = vadd.f32 %v912, %v940
    %942 = vdwg.mxu0
    %v943 = vmax.f32 %v941, 0.0
    %vm944 = vcmask 123904
    %945 = vst.msk [vmem:[#allocation2] sm:$0x3] %vm944, %v943
    // Predicated region
    $region14: #{tpu_custom_call.1} parent=1 // pred_check
      _
    $region15: #{tpu_custom_call.1} parent=1 // pred_check_branch
      %947 = sbr.rel (0) target = $region17
    $region16: #{tpu_custom_call.1} parent=1 // pred_region
      %949 = vsyncadd [#allocation3], 0
      %s951 = sshll.u32 [#allocation2], 4
      %s952 = int_to_ptr.vmem [resolvable:$true] %s951
      %s953 = sshll.u32 %s3, 4
      %s954 = int_to_ptr.hbm [resolvable:$true] %s953
      %956 = dma.vmem_to_hbm [thread:$0]  %s952, 32, %s954, [#allocation3]
    $region17: #{tpu_custom_call.1} parent=1 // pred_fallthru
      _
    // Predicated region
    $region18: #{tpu_custom_call.1} parent=1 // pred_check
      _
    $region19: #{tpu_custom_call.1} parent=1 // pred_check_branch
      %958 = sbr.rel (0) target = $region21
    $region20: #{tpu_custom_call.1} parent=1 // pred_region
      %960 = dma.done [#allocation3], 32
    $region21: #{tpu_custom_call.1} parent=1 // pred_fallthru
      _
    %961 = vsyncpa [#allocation3], 1

// kernel: tpu_custom_call.1
$region0: #{tpu_custom_call.1}
  #allocation0 [shape = 'u32[]', space=smem, size = 0x4, offset = 0x4, fixed_abs, tag = 'smem constant byte address 0x4 - core index']
  #allocation1 [shape = 'u32[72,128]{1,0:T(1,128)}', space=vmem, size = 0x9000, scoped, tag = 'internal scratch']
  %s0 = inlined_call_operand.vmem [shape: f32[2,16], index: 0, kind: input, shape index: {}]
  %s1 = inlined_call_operand.vmem [shape: f32[208,64], index: 1, kind: input, shape index: {}]
  %s2 = inlined_call_operand.vmem [shape: f32[4,64], index: 2, kind: input, shape index: {}]
  %s3 = inlined_call_operand.hbm [shape: f32[2,16], index: 3, kind: output, shape index: {}]
  %s4 = sld [smem:[#allocation0]]
  $region22: #{tpu_custom_call.1} parent=0
    _
  %s6 = ssub.s32 1, %s4
  %s7 = scalar_select 0, %s6, %s4
  $region1: #{tpu_custom_call.1} parent=0
    #allocation2 [shape = 'u8[1024]{0}', space=vmem, size = 0x400, scoped, tag = 'output window, operand 0, single buffered']
    #allocation3 [shape = 's32[1]{0}', space=sflag, size = 0x4, scoped, tag = 'scoped memory for tpu_custom_call.1']
    %8 = vsyncpa [#allocation3], 0
    // Predicated region
    $region2: #{tpu_custom_call.1} parent=1 // pred_check
      _
    $region3: #{tpu_custom_call.1} parent=1 // pred_check_branch
      %10 = sbr.rel (0) target = $region5
    $region4: #{tpu_custom_call.1} parent=1 // pred_region
      _
    $region5: #{tpu_custom_call.1} parent=1 // pred_fallthru
      _
    // Predicated region
    $region6: #{tpu_custom_call.1} parent=1 // pred_check
      _
    $region7: #{tpu_custom_call.1} parent=1 // pred_check_branch
      %12 = sbr.rel (0) target = $region9
    $region8: #{tpu_custom_call.1} parent=1 // pred_region
      _
    $region9: #{tpu_custom_call.1} parent=1 // pred_fallthru
      _
    // Predicated region
    $region10: #{tpu_custom_call.1} parent=1 // pred_check
      _
    $region11: #{tpu_custom_call.1} parent=1 // pred_check_branch
      %14 = sbr.rel (0) target = $region13
    $region12: #{tpu_custom_call.1} parent=1 // pred_region
      _
    $region13: #{tpu_custom_call.1} parent=1 // pred_fallthru
      _
    %v15 = vld [vmem:[%s0] sm:$0x3]
    %v16 = vld [vmem:[%s1] sm:$0xff]
    %v17 = vld [vmem:[%s1 + $0x8] sm:$0xff]
    %v18 = vld [vmem:[%s2] sm:$0x1]
    %v19 = vperm.slane %v18, 0
    %vm20 = vcmask 130048
    %v22 = vsel %vm20, %v15, 0
    %24 = vmatpush.msra.mxu0 0.0
    %25 = vmatpush.msra.mxu0 0.0
    %26 = vmatpush.msra.mxu0 0.0
    %27 = vmatpush.msra.mxu0 0.0
    %28 = vmatpush.msra.mxu0 0.0
    %29 = vmatpush.msra.mxu0 0.0
    %30 = vmatpush.msra.mxu0 0.0
    %31 = vmatpush.msra.mxu0 0.0
    %32 = vmatpush.msra.mxu0 0.0
    %33 = vmatpush.msra.mxu0 0.0
    %34 = vmatpush.msra.mxu0 0.0
    %35 = vmatpush.msra.mxu0 0.0
    %36 = vmatpush.msra.mxu0 0.0
    %37 = vmatpush.msra.mxu0 0.0
    %v38 = vand.u32 %v17, 4294901760
    %39 = vmatpush.msra.mxu0 %v38
    %v40 = vand.u32 %v16, 4294901760
    %41 = vmatpush.msra.mxu0 %v40
    %v42 = vand.u32 %v22, 4294901760
    %v43 = vsub.f32 %v22, %v42
    %v44 = vand.u32 %v43, 4294901760
    %v45 = vsub.f32 %v43, %v44
    %v46 = vand.u32 %v45, 4294901760
    %47 = vmatmul.f32.gmra.mxu0 %v46
    %v48 = vpop.f32.mrf.mxu0
    %v49 = vadd.f32 %v19, %v48
    %50 = vdwg.mxu0
    %51 = vmatpush.msra.mxu0 0.0
    %52 = vmatpush.msra.mxu0 0.0
    %53 = vmatpush.msra.mxu0 0.0
    %54 = vmatpush.msra.mxu0 0.0
    %55 = vmatpush.msra.mxu0 0.0
    %56 = vmatpush.msra.mxu0 0.0
    %57 = vmatpush.msra.mxu0 0.0
    %58 = vmatpush.msra.mxu0 0.0
    %59 = vmatpush.msra.mxu0 0.0
    %60 = vmatpush.msra.mxu0 0.0
    %61 = vmatpush.msra.mxu0 0.0
    %62 = vmatpush.msra.mxu0 0.0
    %63 = vmatpush.msra.mxu0 0.0
    %64 = vmatpush.msra.mxu0 0.0
    %v65 = vand.u32 %v17, 4294901760
    %v66 = vsub.f32 %v17, %v65
    %v67 = vand.u32 %v66, 4294901760
    %v68 = vsub.f32 %v66, %v67
    %v69 = vand.u32 %v68, 4294901760
    %70 = vmatpush.msra.mxu0 %v69
    %v71 = vand.u32 %v16, 4294901760
    %v72 = vsub.f32 %v16, %v71
    %v73 = vand.u32 %v72, 4294901760
    %v74 = vsub.f32 %v72, %v73
    %v75 = vand.u32 %v74, 4294901760
    %76 = vmatpush.msra.mxu0 %v75
    %v77 = vand.u32 %v22, 4294901760
    %78 = vmatmul.f32.gmra.mxu0 %v77
    %v79 = vpop.f32.mrf.mxu0
    %v80 = vadd.f32 %v49, %v79
    %81 = vdwg.mxu0
    %82 = vmatpush.msra.mxu0 0.0
    %83 = vmatpush.msra.mxu0 0.0
    %84 = vmatpush.msra.mxu0 0.0
    %85 = vmatpush.msra.mxu0 0.0
    %86 = vmatpush.msra.mxu0 0.0
    %87 = vmatpush.msra.mxu0 0.0
    %88 = vmatpush.msra.mxu0 0.0
    %89 = vmatpush.msra.mxu0 0.0
    %90 = vmatpush.msra.mxu0 0.0
    %91 = vmatpush.msra.mxu0 0.0
    %92 = vmatpush.msra.mxu0 0.0
    %93 = vmatpush.msra.mxu0 0.0
    %94 = vmatpush.msra.mxu0 0.0
    %95 = vmatpush.msra.mxu0 0.0
    %v96 = vand.u32 %v17, 4294901760
    %v97 = vsub.f32 %v17, %v96
    %98 = vmatpush.msra.mxu0 %v97
    %v99 = vand.u32 %v16, 4294901760
    %v100 = vsub.f32 %v16, %v99
    %101 = vmatpush.msra.mxu0 %v100
    %v102 = vand.u32 %v22, 4294901760
    %v103 = vsub.f32 %v22, %v102
    %104 = vmatmul.f32.gmra.mxu0 %v103
    %v105 = vpop.f32.mrf.mxu0
    %v106 = vadd.f32 %v80, %v105
    %107 = vdwg.mxu0
    %108 = vmatpush.msra.mxu0 0.0
    %109 = vmatpush.msra.mxu0 0.0
    %110 = vmatpush.msra.mxu0 0.0
    %111 = vmatpush.msra.mxu0 0.0
    %112 = vmatpush.msra.mxu0 0.0
    %113 = vmatpush.msra.mxu0 0.0
    %114 = vmatpush.msra.mxu0 0.0
    %115 = vmatpush.msra.mxu0 0.0
    %116 = vmatpush.msra.mxu0 0.0
    %117 = vmatpush.msra.mxu0 0.0
    %118 = vmatpush.msra.mxu0 0.0
    %119 = vmatpush.msra.mxu0 0.0
    %120 = vmatpush.msra.mxu0 0.0
    %121 = vmatpush.msra.mxu0 0.0
    %v122 = vand.u32 %v17, 4294901760
    %123 = vmatpush.msra.mxu0 %v122
    %v124 = vand.u32 %v16, 4294901760
    %125 = vmatpush.msra.mxu0 %v124
    %v126 = vand.u32 %v22, 4294901760
    %v127 = vsub.f32 %v22, %v126
    %v128 = vand.u32 %v127, 4294901760
    %129 = vmatmul.f32.gmra.mxu0 %v128
    %v130 = vpop.f32.mrf.mxu0
    %v131 = vadd.f32 %v106, %v130
    %132 = vdwg.mxu0
    %133 = vmatpush.msra.mxu0 0.0
    %134 = vmatpush.msra.mxu0 0.0
    %135 = vmatpush.msra.mxu0 0.0
    %136 = vmatpush.msra.mxu0 0.0
    %137 = vmatpush.msra.mxu0 0.0
    %138 = vmatpush.msra.mxu0 0.0
    %139 = vmatpush.msra.mxu0 0.0
    %140 = vmatpush.msra.mxu0 0.0
    %141 = vmatpush.msra.mxu0 0.0
    %142 = vmatpush.msra.mxu0 0.0
    %143 = vmatpush.msra.mxu0 0.0
    %144 = vmatpush.msra.mxu0 0.0
    %145 = vmatpush.msra.mxu0 0.0
    %146 = vmatpush.msra.mxu0 0.0
    %v147 = vand.u32 %v17, 4294901760
    %v148 = vsub.f32 %v17, %v147
    %v149 = vand.u32 %v148, 4294901760
    %150 = vmatpush.msra.mxu0 %v149
    %v151 = vand.u32 %v16, 4294901760
    %v152 = vsub.f32 %v16, %v151
    %v153 = vand.u32 %v152, 4294901760
    %154 = vmatpush.msra.mxu0 %v153
    %v155 = vand.u32 %v22, 4294901760
    %156 = vmatmul.f32.gmra.mxu0 %v155
    %v157 = vpop.f32.mrf.mxu0
    %v158 = vadd.f32 %v131, %v157
    %159 = vdwg.mxu0
    %160 = vmatpush.msra.mxu0 0.0
    %161 = vmatpush.msra.mxu0 0.0
    %162 = vmatpush.msra.mxu0 0.0
    %163 = vmatpush.msra.mxu0 0.0
    %164 = vmatpush.msra.mxu0 0.0
    %165 = vmatpush.msra.mxu0 0.0
    %166 = vmatpush.msra.mxu0 0.0
    %167 = vmatpush.msra.mxu0 0.0
    %168 = vmatpush.msra.mxu0 0.0
    %169 = vmatpush.msra.mxu0 0.0
    %170 = vmatpush.msra.mxu0 0.0
    %171 = vmatpush.msra.mxu0 0.0
    %172 = vmatpush.msra.mxu0 0.0
    %173 = vmatpush.msra.mxu0 0.0
    %v174 = vand.u32 %v17, 4294901760
    %175 = vmatpush.msra.mxu0 %v174
    %v176 = vand.u32 %v16, 4294901760
    %177 = vmatpush.msra.mxu0 %v176
    %v178 = vand.u32 %v22, 4294901760
    %179 = vmatmul.f32.gmra.mxu0 %v178
    %v180 = vpop.f32.mrf.mxu0
    %v181 = vadd.f32 %v158, %v180
    %182 = vdwg.mxu0
    %v183 = vlaneseq
    %v184 = vand.u32 %v183, 127
    %vm185 = vcmp.lt.s32.totalorder %v184, 32
    %v186 = vmax.f32 %v181, 0.0
    %v187 = vsel %vm185, %v186, %v181
    %v188 = vld [vmem:[%s1 + $0x10] sm:$0xff]
    %v189 = vld [vmem:[%s1 + $0x18] sm:$0xff]
    %v190 = vld [vmem:[%s1 + $0x20] sm:$0xff]
    %v191 = vld [vmem:[%s1 + $0x28] sm:$0xff]
    %v192 = vld [vmem:[%s1 + $0x30] sm:$0xff]
    %v193 = vld [vmem:[%s1 + $0x38] sm:$0xff]
    %v194 = vld [vmem:[%s1 + $0x40] sm:$0xff]
    %v195 = vld [vmem:[%s1 + $0x48] sm:$0xff]
    %v196 = vld [vmem:[%s2 + $0x1] sm:$0x1]
    %v197 = vperm.slane %v196, 0
    %vm198 = vcmask 523264
    %v200 = vsel %vm198, %v187, 0
    %202 = vmatpush.msra.mxu0 0.0
    %203 = vmatpush.msra.mxu0 0.0
    %204 = vmatpush.msra.mxu0 0.0
    %205 = vmatpush.msra.mxu0 0.0
    %206 = vmatpush.msra.mxu0 0.0
    %207 = vmatpush.msra.mxu0 0.0
    %208 = vmatpush.msra.mxu0 0.0
    %209 = vmatpush.msra.mxu0 0.0
    %v210 = vand.u32 %v195, 4294901760
    %211 = vmatpush.msra.mxu0 %v210
    %v212 = vand.u32 %v194, 4294901760
    %213 = vmatpush.msra.mxu0 %v212
    %v214 = vand.u32 %v193, 4294901760
    %215 = vmatpush.msra.mxu0 %v214
    %v216 = vand.u32 %v192, 4294901760
    %217 = vmatpush.msra.mxu0 %v216
    %v218 = vand.u32 %v191, 4294901760
    %219 = vmatpush.msra.mxu0 %v218
    %v220 = vand.u32 %v190, 4294901760
    %221 = vmatpush.msra.mxu0 %v220
    %v222 = vand.u32 %v189, 4294901760
    %223 = vmatpush.msra.mxu0 %v222
    %v224 = vand.u32 %v188, 4294901760
    %225 = vmatpush.msra.mxu0 %v224
    %v226 = vand.u32 %v200, 4294901760
    %v227 = vsub.f32 %v200, %v226
    %v228 = vand.u32 %v227, 4294901760
    %v229 = vsub.f32 %v227, %v228
    %v230 = vand.u32 %v229, 4294901760
    %231 = vmatmul.f32.gmra.mxu0 %v230
    %v232 = vpop.f32.mrf.mxu0
    %v233 = vadd.f32 %v197, %v232
    %234 = vdwg.mxu0
    %235 = vmatpush.msra.mxu0 0.0
    %236 = vmatpush.msra.mxu0 0.0
    %237 = vmatpush.msra.mxu0 0.0
    %238 = vmatpush.msra.mxu0 0.0
    %239 = vmatpush.msra.mxu0 0.0
    %240 = vmatpush.msra.mxu0 0.0
    %241 = vmatpush.msra.mxu0 0.0
    %242 = vmatpush.msra.mxu0 0.0
    %v243 = vand.u32 %v195, 4294901760
    %v244 = vsub.f32 %v195, %v243
    %v245 = vand.u32 %v244, 4294901760
    %v246 = vsub.f32 %v244, %v245
    %v247 = vand.u32 %v246, 4294901760
    %248 = vmatpush.msra.mxu0 %v247
    %v249 = vand.u32 %v194, 4294901760
    %v250 = vsub.f32 %v194, %v249
    %v251 = vand.u32 %v250, 4294901760
    %v252 = vsub.f32 %v250, %v251
    %v253 = vand.u32 %v252, 4294901760
    %254 = vmatpush.msra.mxu0 %v253
    %v255 = vand.u32 %v193, 4294901760
    %v256 = vsub.f32 %v193, %v255
    %v257 = vand.u32 %v256, 4294901760
    %v258 = vsub.f32 %v256, %v257
    %v259 = vand.u32 %v258, 4294901760
    %260 = vmatpush.msra.mxu0 %v259
    %v261 = vand.u32 %v192, 4294901760
    %v262 = vsub.f32 %v192, %v261
    %v263 = vand.u32 %v262, 4294901760
    %v264 = vsub.f32 %v262, %v263
    %v265 = vand.u32 %v264, 4294901760
    %266 = vmatpush.msra.mxu0 %v265
    %v267 = vand.u32 %v191, 4294901760
    %v268 = vsub.f32 %v191, %v267
    %v269 = vand.u32 %v268, 4294901760
    %v270 = vsub.f32 %v268, %v269
    %v271 = vand.u32 %v270, 4294901760
    %272 = vmatpush.msra.mxu0 %v271
    %v273 = vand.u32 %v190, 4294901760
    %v274 = vsub.f32 %v190, %v273
    %v275 = vand.u32 %v274, 4294901760
    %v276 = vsub.f32 %v274, %v275
    %v277 = vand.u32 %v276, 4294901760
    %278 = vmatpush.msra.mxu0 %v277
    %v279 = vand.u32 %v189, 4294901760
    %v280 = vsub.f32 %v189, %v279
    %v281 = vand.u32 %v280, 4294901760
    %v282 = vsub.f32 %v280, %v281
    %v283 = vand.u32 %v282, 4294901760
    %284 = vmatpush.msra.mxu0 %v283
    %v285 = vand.u32 %v188, 4294901760
    %v286 = vsub.f32 %v188, %v285
    %v287 = vand.u32 %v286, 4294901760
    %v288 = vsub.f32 %v286, %v287
    %v289 = vand.u32 %v288, 4294901760
    %290 = vmatpush.msra.mxu0 %v289
    %v291 = vand.u32 %v200, 4294901760
    %292 = vmatmul.f32.gmra.mxu0 %v291
    %v293 = vpop.f32.mrf.mxu0
    %v294 = vadd.f32 %v233, %v293
    %295 = vdwg.mxu0
    %296 = vmatpush.msra.mxu0 0.0
    %297 = vmatpush.msra.mxu0 0.0
    %298 = vmatpush.msra.mxu0 0.0
    %299 = vmatpush.msra.mxu0 0.0
    %300 = vmatpush.msra.mxu0 0.0
    %301 = vmatpush.msra.mxu0 0.0
    %302 = vmatpush.msra.mxu0 0.0
    %303 = vmatpush.msra.mxu0 0.0
    %v304 = vand.u32 %v195, 4294901760
    %v305 = vsub.f32 %v195, %v304
    %306 = vmatpush.msra.mxu0 %v305
    %v307 = vand.u32 %v194, 4294901760
    %v308 = vsub.f32 %v194, %v307
    %309 = vmatpush.msra.mxu0 %v308
    %v310 = vand.u32 %v193, 4294901760
    %v311 = vsub.f32 %v193, %v310
    %312 = vmatpush.msra.mxu0 %v311
    %v313 = vand.u32 %v192, 4294901760
    %v314 = vsub.f32 %v192, %v313
    %315 = vmatpush.msra.mxu0 %v314
    %v316 = vand.u32 %v191, 4294901760
    %v317 = vsub.f32 %v191, %v316
    %318 = vmatpush.msra.mxu0 %v317
    %v319 = vand.u32 %v190, 4294901760
    %v320 = vsub.f32 %v190, %v319
    %321 = vmatpush.msra.mxu0 %v320
    %v322 = vand.u32 %v189, 4294901760
    %v323 = vsub.f32 %v189, %v322
    %324 = vmatpush.msra.mxu0 %v323
    %v325 = vand.u32 %v188, 4294901760
    %v326 = vsub.f32 %v188, %v325
    %327 = vmatpush.msra.mxu0 %v326
    %v328 = vand.u32 %v200, 4294901760
    %v329 = vsub.f32 %v200, %v328
    %330 = vmatmul.f32.gmra.mxu0 %v329
    %v331 = vpop.f32.mrf.mxu0
    %v332 = vadd.f32 %v294, %v331
    %333 = vdwg.mxu0
    %334 = vmatpush.msra.mxu0 0.0
    %335 = vmatpush.msra.mxu0 0.0
    %336 = vmatpush.msra.mxu0 0.0
    %337 = vmatpush.msra.mxu0 0.0
    %338 = vmatpush.msra.mxu0 0.0
    %339 = vmatpush.msra.mxu0 0.0
    %340 = vmatpush.msra.mxu0 0.0
    %341 = vmatpush.msra.mxu0 0.0
    %v342 = vand.u32 %v195, 4294901760
    %343 = vmatpush.msra.mxu0 %v342
    %v344 = vand.u32 %v194, 4294901760
    %345 = vmatpush.msra.mxu0 %v344
    %v346 = vand.u32 %v193, 4294901760
    %347 = vmatpush.msra.mxu0 %v346
    %v348 = vand.u32 %v192, 4294901760
    %349 = vmatpush.msra.mxu0 %v348
    %v350 = vand.u32 %v191, 4294901760
    %351 = vmatpush.msra.mxu0 %v350
    %v352 = vand.u32 %v190, 4294901760
    %353 = vmatpush.msra.mxu0 %v352
    %v354 = vand.u32 %v189, 4294901760
    %355 = vmatpush.msra.mxu0 %v354
    %v356 = vand.u32 %v188, 4294901760
    %357 = vmatpush.msra.mxu0 %v356
    %v358 = vand.u32 %v200, 4294901760
    %v359 = vsub.f32 %v200, %v358
    %v360 = vand.u32 %v359, 4294901760
    %361 = vmatmul.f32.gmra.mxu0 %v360
    %v362 = vpop.f32.mrf.mxu0
    %v363 = vadd.f32 %v332, %v362
    %364 = vdwg.mxu0
    %365 = vmatpush.msra.mxu0 0.0
    %366 = vmatpush.msra.mxu0 0.0
    %367 = vmatpush.msra.mxu0 0.0
    %368 = vmatpush.msra.mxu0 0.0
    %369 = vmatpush.msra.mxu0 0.0
    %370 = vmatpush.msra.mxu0 0.0
    %371 = vmatpush.msra.mxu0 0.0
    %372 = vmatpush.msra.mxu0 0.0
    %v373 = vand.u32 %v195, 4294901760
    %v374 = vsub.f32 %v195, %v373
    %v375 = vand.u32 %v374, 4294901760
    %376 = vmatpush.msra.mxu0 %v375
    %v377 = vand.u32 %v194, 4294901760
    %v378 = vsub.f32 %v194, %v377
    %v379 = vand.u32 %v378, 4294901760
    %380 = vmatpush.msra.mxu0 %v379
    %v381 = vand.u32 %v193, 4294901760
    %v382 = vsub.f32 %v193, %v381
    %v383 = vand.u32 %v382, 4294901760
    %384 = vmatpush.msra.mxu0 %v383
    %v385 = vand.u32 %v192, 4294901760
    %v386 = vsub.f32 %v192, %v385
    %v387 = vand.u32 %v386, 4294901760
    %388 = vmatpush.msra.mxu0 %v387
    %v389 = vand.u32 %v191, 4294901760
    %v390 = vsub.f32 %v191, %v389
    %v391 = vand.u32 %v390, 4294901760
    %392 = vmatpush.msra.mxu0 %v391
    %v393 = vand.u32 %v190, 4294901760
    %v394 = vsub.f32 %v190, %v393
    %v395 = vand.u32 %v394, 4294901760
    %396 = vmatpush.msra.mxu0 %v395
    %v397 = vand.u32 %v189, 4294901760
    %v398 = vsub.f32 %v189, %v397
    %v399 = vand.u32 %v398, 4294901760
    %400 = vmatpush.msra.mxu0 %v399
    %v401 = vand.u32 %v188, 4294901760
    %v402 = vsub.f32 %v188, %v401
    %v403 = vand.u32 %v402, 4294901760
    %404 = vmatpush.msra.mxu0 %v403
    %v405 = vand.u32 %v200, 4294901760
    %406 = vmatmul.f32.gmra.mxu0 %v405
    %v407 = vpop.f32.mrf.mxu0
    %v408 = vadd.f32 %v363, %v407
    %409 = vdwg.mxu0
    %410 = vmatpush.msra.mxu0 0.0
    %411 = vmatpush.msra.mxu0 0.0
    %412 = vmatpush.msra.mxu0 0.0
    %413 = vmatpush.msra.mxu0 0.0
    %414 = vmatpush.msra.mxu0 0.0
    %415 = vmatpush.msra.mxu0 0.0
    %416 = vmatpush.msra.mxu0 0.0
    %417 = vmatpush.msra.mxu0 0.0
    %v418 = vand.u32 %v195, 4294901760
    %419 = vmatpush.msra.mxu0 %v418
    %v420 = vand.u32 %v194, 4294901760
    %421 = vmatpush.msra.mxu0 %v420
    %v422 = vand.u32 %v193, 4294901760
    %423 = vmatpush.msra.mxu0 %v422
    %v424 = vand.u32 %v192, 4294901760
    %425 = vmatpush.msra.mxu0 %v424
    %v426 = vand.u32 %v191, 4294901760
    %427 = vmatpush.msra.mxu0 %v426
    %v428 = vand.u32 %v190, 4294901760
    %429 = vmatpush.msra.mxu0 %v428
    %v430 = vand.u32 %v189, 4294901760
    %431 = vmatpush.msra.mxu0 %v430
    %v432 = vand.u32 %v188, 4294901760
    %433 = vmatpush.msra.mxu0 %v432
    %v434 = vand.u32 %v200, 4294901760
    %435 = vmatmul.f32.gmra.mxu0 %v434
    %v436 = vpop.f32.mrf.mxu0
    %v437 = vadd.f32 %v408, %v436
    %438 = vdwg.mxu0
    %v439 = vmax.f32 %v437, 0.0
    %v440 = vadd.f32 %v187, %v439
    %v441 = vld [vmem:[%s1 + $0x50] sm:$0xff]
    %v442 = vld [vmem:[%s1 + $0x58] sm:$0xff]
    %v443 = vld [vmem:[%s1 + $0x60] sm:$0xff]
    %v444 = vld [vmem:[%s1 + $0x68] sm:$0xff]
    %v445 = vld [vmem:[%s1 + $0x70] sm:$0xff]
    %v446 = vld [vmem:[%s1 + $0x78] sm:$0xff]
    %v447 = vld [vmem:[%s1 + $0x80] sm:$0xff]
    %v448 = vld [vmem:[%s1 + $0x88] sm:$0xff]
    %v449 = vld [vmem:[%s2 + $0x2] sm:$0x1]
    %v450 = vperm.slane %v449, 0
    %v452 = vsel %vm198, %v440, 0
    %454 = vmatpush.msra.mxu0 0.0
    %455 = vmatpush.msra.mxu0 0.0
    %456 = vmatpush.msra.mxu0 0.0
    %457 = vmatpush.msra.mxu0 0.0
    %458 = vmatpush.msra.mxu0 0.0
    %459 = vmatpush.msra.mxu0 0.0
    %460 = vmatpush.msra.mxu0 0.0
    %461 = vmatpush.msra.mxu0 0.0
    %v462 = vand.u32 %v448, 4294901760
    %463 = vmatpush.msra.mxu0 %v462
    %v464 = vand.u32 %v447, 4294901760
    %465 = vmatpush.msra.mxu0 %v464
    %v466 = vand.u32 %v446, 4294901760
    %467 = vmatpush.msra.mxu0 %v466
    %v468 = vand.u32 %v445, 4294901760
    %469 = vmatpush.msra.mxu0 %v468
    %v470 = vand.u32 %v444, 4294901760
    %471 = vmatpush.msra.mxu0 %v470
    %v472 = vand.u32 %v443, 4294901760
    %473 = vmatpush.msra.mxu0 %v472
    %v474 = vand.u32 %v442, 4294901760
    %475 = vmatpush.msra.mxu0 %v474
    %v476 = vand.u32 %v441, 4294901760
    %477 = vmatpush.msra.mxu0 %v476
    %v478 = vand.u32 %v452, 4294901760
    %v479 = vsub.f32 %v452, %v478
    %v480 = vand.u32 %v479, 4294901760
    %v481 = vsub.f32 %v479, %v480
    %v482 = vand.u32 %v481, 4294901760
    %483 = vmatmul.f32.gmra.mxu0 %v482
    %v484 = vpop.f32.mrf.mxu0
    %v485 = vadd.f32 %v450, %v484
    %486 = vdwg.mxu0
    %487 = vmatpush.msra.mxu0 0.0
    %488 = vmatpush.msra.mxu0 0.0
    %489 = vmatpush.msra.mxu0 0.0
    %490 = vmatpush.msra.mxu0 0.0
    %491 = vmatpush.msra.mxu0 0.0
    %492 = vmatpush.msra.mxu0 0.0
    %493 = vmatpush.msra.mxu0 0.0
    %494 = vmatpush.msra.mxu0 0.0
    %v495 = vand.u32 %v448, 4294901760
    %v496 = vsub.f32 %v448, %v495
    %v497 = vand.u32 %v496, 4294901760
    %v498 = vsub.f32 %v496, %v497
    %v499 = vand.u32 %v498, 4294901760
    %500 = vmatpush.msra.mxu0 %v499
    %v501 = vand.u32 %v447, 4294901760
    %v502 = vsub.f32 %v447, %v501
    %v503 = vand.u32 %v502, 4294901760
    %v504 = vsub.f32 %v502, %v503
    %v505 = vand.u32 %v504, 4294901760
    %506 = vmatpush.msra.mxu0 %v505
    %v507 = vand.u32 %v446, 4294901760
    %v508 = vsub.f32 %v446, %v507
    %v509 = vand.u32 %v508, 4294901760
    %v510 = vsub.f32 %v508, %v509
    %v511 = vand.u32 %v510, 4294901760
    %512 = vmatpush.msra.mxu0 %v511
    %v513 = vand.u32 %v445, 4294901760
    %v514 = vsub.f32 %v445, %v513
    %v515 = vand.u32 %v514, 4294901760
    %v516 = vsub.f32 %v514, %v515
    %v517 = vand.u32 %v516, 4294901760
    %518 = vmatpush.msra.mxu0 %v517
    %v519 = vand.u32 %v444, 4294901760
    %v520 = vsub.f32 %v444, %v519
    %v521 = vand.u32 %v520, 4294901760
    %v522 = vsub.f32 %v520, %v521
    %v523 = vand.u32 %v522, 4294901760
    %524 = vmatpush.msra.mxu0 %v523
    %v525 = vand.u32 %v443, 4294901760
    %v526 = vsub.f32 %v443, %v525
    %v527 = vand.u32 %v526, 4294901760
    %v528 = vsub.f32 %v526, %v527
    %v529 = vand.u32 %v528, 4294901760
    %530 = vmatpush.msra.mxu0 %v529
    %v531 = vand.u32 %v442, 4294901760
    %v532 = vsub.f32 %v442, %v531
    %v533 = vand.u32 %v532, 4294901760
    %v534 = vsub.f32 %v532, %v533
    %v535 = vand.u32 %v534, 4294901760
    %536 = vmatpush.msra.mxu0 %v535
    %v537 = vand.u32 %v441, 4294901760
    %v538 = vsub.f32 %v441, %v537
    %v539 = vand.u32 %v538, 4294901760
    %v540 = vsub.f32 %v538, %v539
    %v541 = vand.u32 %v540, 4294901760
    %542 = vmatpush.msra.mxu0 %v541
    %v543 = vand.u32 %v452, 4294901760
    %544 = vmatmul.f32.gmra.mxu0 %v543
    %v545 = vpop.f32.mrf.mxu0
    %v546 = vadd.f32 %v485, %v545
    %547 = vdwg.mxu0
    %548 = vmatpush.msra.mxu0 0.0
    %549 = vmatpush.msra.mxu0 0.0
    %550 = vmatpush.msra.mxu0 0.0
    %551 = vmatpush.msra.mxu0 0.0
    %552 = vmatpush.msra.mxu0 0.0
    %553 = vmatpush.msra.mxu0 0.0
    %554 = vmatpush.msra.mxu0 0.0
    %555 = vmatpush.msra.mxu0 0.0
    %v556 = vand.u32 %v448, 4294901760
    %v557 = vsub.f32 %v448, %v556
    %558 = vmatpush.msra.mxu0 %v557
    %v559 = vand.u32 %v447, 4294901760
    %v560 = vsub.f32 %v447, %v559
    %561 = vmatpush.msra.mxu0 %v560
    %v562 = vand.u32 %v446, 4294901760
    %v563 = vsub.f32 %v446, %v562
    %564 = vmatpush.msra.mxu0 %v563
    %v565 = vand.u32 %v445, 4294901760
    %v566 = vsub.f32 %v445, %v565
    %567 = vmatpush.msra.mxu0 %v566
    %v568 = vand.u32 %v444, 4294901760
    %v569 = vsub.f32 %v444, %v568
    %570 = vmatpush.msra.mxu0 %v569
    %v571 = vand.u32 %v443, 4294901760
    %v572 = vsub.f32 %v443, %v571
    %573 = vmatpush.msra.mxu0 %v572
    %v574 = vand.u32 %v442, 4294901760
    %v575 = vsub.f32 %v442, %v574
    %576 = vmatpush.msra.mxu0 %v575
    %v577 = vand.u32 %v441, 4294901760
    %v578 = vsub.f32 %v441, %v577
    %579 = vmatpush.msra.mxu0 %v578
    %v580 = vand.u32 %v452, 4294901760
    %v581 = vsub.f32 %v452, %v580
    %582 = vmatmul.f32.gmra.mxu0 %v581
    %v583 = vpop.f32.mrf.mxu0
    %v584 = vadd.f32 %v546, %v583
    %585 = vdwg.mxu0
    %586 = vmatpush.msra.mxu0 0.0
    %587 = vmatpush.msra.mxu0 0.0
    %588 = vmatpush.msra.mxu0 0.0
    %589 = vmatpush.msra.mxu0 0.0
    %590 = vmatpush.msra.mxu0 0.0
    %591 = vmatpush.msra.mxu0 0.0
    %592 = vmatpush.msra.mxu0 0.0
    %593 = vmatpush.msra.mxu0 0.0
    %v594 = vand.u32 %v448, 4294901760
    %595 = vmatpush.msra.mxu0 %v594
    %v596 = vand.u32 %v447, 4294901760
    %597 = vmatpush.msra.mxu0 %v596
    %v598 = vand.u32 %v446, 4294901760
    %599 = vmatpush.msra.mxu0 %v598
    %v600 = vand.u32 %v445, 4294901760
    %601 = vmatpush.msra.mxu0 %v600
    %v602 = vand.u32 %v444, 4294901760
    %603 = vmatpush.msra.mxu0 %v602
    %v604 = vand.u32 %v443, 4294901760
    %605 = vmatpush.msra.mxu0 %v604
    %v606 = vand.u32 %v442, 4294901760
    %607 = vmatpush.msra.mxu0 %v606
    %v608 = vand.u32 %v441, 4294901760
    %609 = vmatpush.msra.mxu0 %v608
    %v610 = vand.u32 %v452, 4294901760
    %v611 = vsub.f32 %v452, %v610
    %v612 = vand.u32 %v611, 4294901760
    %613 = vmatmul.f32.gmra.mxu0 %v612
    %v614 = vpop.f32.mrf.mxu0
    %v615 = vadd.f32 %v584, %v614
    %616 = vdwg.mxu0
    %617 = vmatpush.msra.mxu0 0.0
    %618 = vmatpush.msra.mxu0 0.0
    %619 = vmatpush.msra.mxu0 0.0
    %620 = vmatpush.msra.mxu0 0.0
    %621 = vmatpush.msra.mxu0 0.0
    %622 = vmatpush.msra.mxu0 0.0
    %623 = vmatpush.msra.mxu0 0.0
    %624 = vmatpush.msra.mxu0 0.0
    %v625 = vand.u32 %v448, 4294901760
    %v626 = vsub.f32 %v448, %v625
    %v627 = vand.u32 %v626, 4294901760
    %628 = vmatpush.msra.mxu0 %v627
    %v629 = vand.u32 %v447, 4294901760
    %v630 = vsub.f32 %v447, %v629
    %v631 = vand.u32 %v630, 4294901760
    %632 = vmatpush.msra.mxu0 %v631
    %v633 = vand.u32 %v446, 4294901760
    %v634 = vsub.f32 %v446, %v633
    %v635 = vand.u32 %v634, 4294901760
    %636 = vmatpush.msra.mxu0 %v635
    %v637 = vand.u32 %v445, 4294901760
    %v638 = vsub.f32 %v445, %v637
    %v639 = vand.u32 %v638, 4294901760
    %640 = vmatpush.msra.mxu0 %v639
    %v641 = vand.u32 %v444, 4294901760
    %v642 = vsub.f32 %v444, %v641
    %v643 = vand.u32 %v642, 4294901760
    %644 = vmatpush.msra.mxu0 %v643
    %v645 = vand.u32 %v443, 4294901760
    %v646 = vsub.f32 %v443, %v645
    %v647 = vand.u32 %v646, 4294901760
    %648 = vmatpush.msra.mxu0 %v647
    %v649 = vand.u32 %v442, 4294901760
    %v650 = vsub.f32 %v442, %v649
    %v651 = vand.u32 %v650, 4294901760
    %652 = vmatpush.msra.mxu0 %v651
    %v653 = vand.u32 %v441, 4294901760
    %v654 = vsub.f32 %v441, %v653
    %v655 = vand.u32 %v654, 4294901760
    %656 = vmatpush.msra.mxu0 %v655
    %v657 = vand.u32 %v452, 4294901760
    %658 = vmatmul.f32.gmra.mxu0 %v657
    %v659 = vpop.f32.mrf.mxu0
    %v660 = vadd.f32 %v615, %v659
    %661 = vdwg.mxu0
    %662 = vmatpush.msra.mxu0 0.0
    %663 = vmatpush.msra.mxu0 0.0
    %664 = vmatpush.msra.mxu0 0.0
    %665 = vmatpush.msra.mxu0 0.0
    %666 = vmatpush.msra.mxu0 0.0
    %667 = vmatpush.msra.mxu0 0.0
    %668 = vmatpush.msra.mxu0 0.0
    %669 = vmatpush.msra.mxu0 0.0
    %v670 = vand.u32 %v448, 4294901760
    %671 = vmatpush.msra.mxu0 %v670
    %v672 = vand.u32 %v447, 4294901760
    %673 = vmatpush.msra.mxu0 %v672
    %v674 = vand.u32 %v446, 4294901760
    %675 = vmatpush.msra.mxu0 %v674
    %v676 = vand.u32 %v445, 4294901760
    %677 = vmatpush.msra.mxu0 %v676
    %v678 = vand.u32 %v444, 4294901760
    %679 = vmatpush.msra.mxu0 %v678
    %v680 = vand.u32 %v443, 4294901760
    %681 = vmatpush.msra.mxu0 %v680
    %v682 = vand.u32 %v442, 4294901760
    %683 = vmatpush.msra.mxu0 %v682
    %v684 = vand.u32 %v441, 4294901760
    %685 = vmatpush.msra.mxu0 %v684
    %v686 = vand.u32 %v452, 4294901760
    %687 = vmatmul.f32.gmra.mxu0 %v686
    %v688 = vpop.f32.mrf.mxu0
    %v689 = vadd.f32 %v660, %v688
    %690 = vdwg.mxu0
    %v691 = vmax.f32 %v689, 0.0
    %v692 = vadd.f32 %v440, %v691
    %v693 = vld [vmem:[%s1 + $0x90] sm:$0xff]
    %v694 = vld [vmem:[%s1 + $0x98] sm:$0xff]
    %v695 = vld [vmem:[%s1 + $0xa0] sm:$0xff]
    %v696 = vld [vmem:[%s1 + $0xa8] sm:$0xff]
    %v697 = vld [vmem:[%s1 + $0xb0] sm:$0xff]
    %v698 = vld [vmem:[%s1 + $0xb8] sm:$0xff]
    %v699 = vld [vmem:[%s1 + $0xc0] sm:$0xff]
    %v700 = vld [vmem:[%s1 + $0xc8] sm:$0xff]
    %v701 = vld [vmem:[%s2 + $0x3] sm:$0x1]
    %v702 = vperm.slane %v701, 0
    %v704 = vsel %vm198, %v692, 0
    %706 = vmatpush.msra.mxu0 0.0
    %707 = vmatpush.msra.mxu0 0.0
    %708 = vmatpush.msra.mxu0 0.0
    %709 = vmatpush.msra.mxu0 0.0
    %710 = vmatpush.msra.mxu0 0.0
    %711 = vmatpush.msra.mxu0 0.0
    %712 = vmatpush.msra.mxu0 0.0
    %713 = vmatpush.msra.mxu0 0.0
    %v714 = vand.u32 %v700, 4294901760
    %715 = vmatpush.msra.mxu0 %v714
    %v716 = vand.u32 %v699, 4294901760
    %717 = vmatpush.msra.mxu0 %v716
    %v718 = vand.u32 %v698, 4294901760
    %719 = vmatpush.msra.mxu0 %v718
    %v720 = vand.u32 %v697, 4294901760
    %721 = vmatpush.msra.mxu0 %v720
    %v722 = vand.u32 %v696, 4294901760
    %723 = vmatpush.msra.mxu0 %v722
    %v724 = vand.u32 %v695, 4294901760
    %725 = vmatpush.msra.mxu0 %v724
    %v726 = vand.u32 %v694, 4294901760
    %727 = vmatpush.msra.mxu0 %v726
    %v728 = vand.u32 %v693, 4294901760
    %729 = vmatpush.msra.mxu0 %v728
    %v730 = vand.u32 %v704, 4294901760
    %v731 = vsub.f32 %v704, %v730
    %v732 = vand.u32 %v731, 4294901760
    %v733 = vsub.f32 %v731, %v732
    %v734 = vand.u32 %v733, 4294901760
    %735 = vmatmul.f32.gmra.mxu0 %v734
    %v736 = vpop.f32.mrf.mxu0
    %v737 = vadd.f32 %v702, %v736
    %738 = vdwg.mxu0
    %739 = vmatpush.msra.mxu0 0.0
    %740 = vmatpush.msra.mxu0 0.0
    %741 = vmatpush.msra.mxu0 0.0
    %742 = vmatpush.msra.mxu0 0.0
    %743 = vmatpush.msra.mxu0 0.0
    %744 = vmatpush.msra.mxu0 0.0
    %745 = vmatpush.msra.mxu0 0.0
    %746 = vmatpush.msra.mxu0 0.0
    %v747 = vand.u32 %v700, 4294901760
    %v748 = vsub.f32 %v700, %v747
    %v749 = vand.u32 %v748, 4294901760
    %v750 = vsub.f32 %v748, %v749
    %v751 = vand.u32 %v750, 4294901760
    %752 = vmatpush.msra.mxu0 %v751
    %v753 = vand.u32 %v699, 4294901760
    %v754 = vsub.f32 %v699, %v753
    %v755 = vand.u32 %v754, 4294901760
    %v756 = vsub.f32 %v754, %v755
    %v757 = vand.u32 %v756, 4294901760
    %758 = vmatpush.msra.mxu0 %v757
    %v759 = vand.u32 %v698, 4294901760
    %v760 = vsub.f32 %v698, %v759
    %v761 = vand.u32 %v760, 4294901760
    %v762 = vsub.f32 %v760, %v761
    %v763 = vand.u32 %v762, 4294901760
    %764 = vmatpush.msra.mxu0 %v763
    %v765 = vand.u32 %v697, 4294901760
    %v766 = vsub.f32 %v697, %v765
    %v767 = vand.u32 %v766, 4294901760
    %v768 = vsub.f32 %v766, %v767
    %v769 = vand.u32 %v768, 4294901760
    %770 = vmatpush.msra.mxu0 %v769
    %v771 = vand.u32 %v696, 4294901760
    %v772 = vsub.f32 %v696, %v771
    %v773 = vand.u32 %v772, 4294901760
    %v774 = vsub.f32 %v772, %v773
    %v775 = vand.u32 %v774, 4294901760
    %776 = vmatpush.msra.mxu0 %v775
    %v777 = vand.u32 %v695, 4294901760
    %v778 = vsub.f32 %v695, %v777
    %v779 = vand.u32 %v778, 4294901760
    %v780 = vsub.f32 %v778, %v779
    %v781 = vand.u32 %v780, 4294901760
    %782 = vmatpush.msra.mxu0 %v781
    %v783 = vand.u32 %v694, 4294901760
    %v784 = vsub.f32 %v694, %v783
    %v785 = vand.u32 %v784, 4294901760
    %v786 = vsub.f32 %v784, %v785
    %v787 = vand.u32 %v786, 4294901760
    %788 = vmatpush.msra.mxu0 %v787
    %v789 = vand.u32 %v693, 4294901760
    %v790 = vsub.f32 %v693, %v789
    %v791 = vand.u32 %v790, 4294901760
    %v792 = vsub.f32 %v790, %v791
    %v793 = vand.u32 %v792, 4294901760
    %794 = vmatpush.msra.mxu0 %v793
    %v795 = vand.u32 %v704, 4294901760
    %796 = vmatmul.f32.gmra.mxu0 %v795
    %v797 = vpop.f32.mrf.mxu0
    %v798 = vadd.f32 %v737, %v797
    %799 = vdwg.mxu0
    %800 = vmatpush.msra.mxu0 0.0
    %801 = vmatpush.msra.mxu0 0.0
    %802 = vmatpush.msra.mxu0 0.0
    %803 = vmatpush.msra.mxu0 0.0
    %804 = vmatpush.msra.mxu0 0.0
    %805 = vmatpush.msra.mxu0 0.0
    %806 = vmatpush.msra.mxu0 0.0
    %807 = vmatpush.msra.mxu0 0.0
    %v808 = vand.u32 %v700, 4294901760
    %v809 = vsub.f32 %v700, %v808
    %810 = vmatpush.msra.mxu0 %v809
    %v811 = vand.u32 %v699, 4294901760
    %v812 = vsub.f32 %v699, %v811
    %813 = vmatpush.msra.mxu0 %v812
    %v814 = vand.u32 %v698, 4294901760
    %v815 = vsub.f32 %v698, %v814
    %816 = vmatpush.msra.mxu0 %v815
    %v817 = vand.u32 %v697, 4294901760
    %v818 = vsub.f32 %v697, %v817
    %819 = vmatpush.msra.mxu0 %v818
    %v820 = vand.u32 %v696, 4294901760
    %v821 = vsub.f32 %v696, %v820
    %822 = vmatpush.msra.mxu0 %v821
    %v823 = vand.u32 %v695, 4294901760
    %v824 = vsub.f32 %v695, %v823
    %825 = vmatpush.msra.mxu0 %v824
    %v826 = vand.u32 %v694, 4294901760
    %v827 = vsub.f32 %v694, %v826
    %828 = vmatpush.msra.mxu0 %v827
    %v829 = vand.u32 %v693, 4294901760
    %v830 = vsub.f32 %v693, %v829
    %831 = vmatpush.msra.mxu0 %v830
    %v832 = vand.u32 %v704, 4294901760
    %v833 = vsub.f32 %v704, %v832
    %834 = vmatmul.f32.gmra.mxu0 %v833
    %v835 = vpop.f32.mrf.mxu0
    %v836 = vadd.f32 %v798, %v835
    %837 = vdwg.mxu0
    %838 = vmatpush.msra.mxu0 0.0
    %839 = vmatpush.msra.mxu0 0.0
    %840 = vmatpush.msra.mxu0 0.0
    %841 = vmatpush.msra.mxu0 0.0
    %842 = vmatpush.msra.mxu0 0.0
    %843 = vmatpush.msra.mxu0 0.0
    %844 = vmatpush.msra.mxu0 0.0
    %845 = vmatpush.msra.mxu0 0.0
    %v846 = vand.u32 %v700, 4294901760
    %847 = vmatpush.msra.mxu0 %v846
    %v848 = vand.u32 %v699, 4294901760
    %849 = vmatpush.msra.mxu0 %v848
    %v850 = vand.u32 %v698, 4294901760
    %851 = vmatpush.msra.mxu0 %v850
    %v852 = vand.u32 %v697, 4294901760
    %853 = vmatpush.msra.mxu0 %v852
    %v854 = vand.u32 %v696, 4294901760
    %855 = vmatpush.msra.mxu0 %v854
    %v856 = vand.u32 %v695, 4294901760
    %857 = vmatpush.msra.mxu0 %v856
    %v858 = vand.u32 %v694, 4294901760
    %859 = vmatpush.msra.mxu0 %v858
    %v860 = vand.u32 %v693, 4294901760
    %861 = vmatpush.msra.mxu0 %v860
    %v862 = vand.u32 %v704, 4294901760
    %v863 = vsub.f32 %v704, %v862
    %v864 = vand.u32 %v863, 4294901760
    %865 = vmatmul.f32.gmra.mxu0 %v864
    %v866 = vpop.f32.mrf.mxu0
    %v867 = vadd.f32 %v836, %v866
    %868 = vdwg.mxu0
    %869 = vmatpush.msra.mxu0 0.0
    %870 = vmatpush.msra.mxu0 0.0
    %871 = vmatpush.msra.mxu0 0.0
    %872 = vmatpush.msra.mxu0 0.0
    %873 = vmatpush.msra.mxu0 0.0
    %874 = vmatpush.msra.mxu0 0.0
    %875 = vmatpush.msra.mxu0 0.0
    %876 = vmatpush.msra.mxu0 0.0
    %v877 = vand.u32 %v700, 4294901760
    %v878 = vsub.f32 %v700, %v877
    %v879 = vand.u32 %v878, 4294901760
    %880 = vmatpush.msra.mxu0 %v879
    %v881 = vand.u32 %v699, 4294901760
    %v882 = vsub.f32 %v699, %v881
    %v883 = vand.u32 %v882, 4294901760
    %884 = vmatpush.msra.mxu0 %v883
    %v885 = vand.u32 %v698, 4294901760
    %v886 = vsub.f32 %v698, %v885
    %v887 = vand.u32 %v886, 4294901760
    %888 = vmatpush.msra.mxu0 %v887
    %v889 = vand.u32 %v697, 4294901760
    %v890 = vsub.f32 %v697, %v889
    %v891 = vand.u32 %v890, 4294901760
    %892 = vmatpush.msra.mxu0 %v891
    %v893 = vand.u32 %v696, 4294901760
    %v894 = vsub.f32 %v696, %v893
    %v895 = vand.u32 %v894, 4294901760
    %896 = vmatpush.msra.mxu0 %v895
    %v897 = vand.u32 %v695, 4294901760
    %v898 = vsub.f32 %v695, %v897
    %v899 = vand.u32 %v898, 4294901760
    %900 = vmatpush.msra.mxu0 %v899
    %v901 = vand.u32 %v694, 4294901760
    %v902 = vsub.f32 %v694, %v901
    %v903 = vand.u32 %v902, 4294901760
    %904 = vmatpush.msra.mxu0 %v903
    %v905 = vand.u32 %v693, 4294901760
    %v906 = vsub.f32 %v693, %v905
    %v907 = vand.u32 %v906, 4294901760
    %908 = vmatpush.msra.mxu0 %v907
    %v909 = vand.u32 %v704, 4294901760
    %910 = vmatmul.f32.gmra.mxu0 %v909
    %v911 = vpop.f32.mrf.mxu0
    %v912 = vadd.f32 %v867, %v911
    %913 = vdwg.mxu0
    %914 = vmatpush.msra.mxu0 0.0
    %915 = vmatpush.msra.mxu0 0.0
    %916 = vmatpush.msra.mxu0 0.0
    %917 = vmatpush.msra.mxu0 0.0
    %918 = vmatpush.msra.mxu0 0.0
    %919 = vmatpush.msra.mxu0 0.0
    %920 = vmatpush.msra.mxu0 0.0
    %921 = vmatpush.msra.mxu0 0.0
    %v922 = vand.u32 %v700, 4294901760
    %923 = vmatpush.msra.mxu0 %v922
    %v924 = vand.u32 %v699, 4294901760
    %925 = vmatpush.msra.mxu0 %v924
    %v926 = vand.u32 %v698, 4294901760
    %927 = vmatpush.msra.mxu0 %v926
    %v928 = vand.u32 %v697, 4294901760
    %929 = vmatpush.msra.mxu0 %v928
    %v930 = vand.u32 %v696, 4294901760
    %931 = vmatpush.msra.mxu0 %v930
    %v932 = vand.u32 %v695, 4294901760
    %933 = vmatpush.msra.mxu0 %v932
    %v934 = vand.u32 %v694, 4294901760
    %935 = vmatpush.msra.mxu0 %v934
    %v936 = vand.u32 %v693, 4294901760
    %937 = vmatpush.msra.mxu0 %v936
    %v938 = vand.u32 %v704, 4294901760
    %939 = vmatmul.f32.gmra.mxu0 %v938
    %v940 = vpop.f32.mrf.mxu0
    %v941 = vadd.f32 %v912, %v940
    %942 = vdwg.mxu0
    %v943 = vmax.f32 %v941, 0.0
    %vm944 = vcmask 123904
    %945 = vst.msk [vmem:[#allocation2] sm:$0x3] %vm944, %v943
    // Predicated region
    $region14: #{tpu_custom_call.1} parent=1 // pred_check
      _
    $region15: #{tpu_custom_call.1} parent=1 // pred_check_branch
      %947 = sbr.rel (0) target = $region17
    $region16: #{tpu_custom_call.1} parent=1 // pred_region
      %949 = vsyncadd [#allocation3], 0
      %s951 = sshll.u32 [#allocation2], 4
      %s952 = int_to_ptr.vmem [resolvable:$true] %s951
      %s953 = sshll.u32 %s3, 4
      %s954 = int_to_ptr.hbm [resolvable:$true] %s953
      %956 = dma.vmem_to_hbm [thread:$0]  %s952, 32, %s954, [#allocation3]
    $region17: #{tpu_custom_call.1} parent=1 // pred_fallthru
      _
    // Predicated region
    $region18: #{tpu_custom_call.1} parent=1 // pred_check
      _
    $region19: #{tpu_custom_call.1} parent=1 // pred_check_branch
      %958 = sbr.rel (0) target = $region21
    $region20: #{tpu_custom_call.1} parent=1 // pred_region
      %960 = dma.done [#allocation3], 32
    $region21: #{tpu_custom_call.1} parent=1 // pred_fallthru
      _
    %961 = vsyncpa [#allocation3], 1

</llo_original>
